<compile_context>
chip_gen: v7x
topology: tpu7x:2x2x1
jax: 0.10.0
libtpu: 0.0.40
codegen_flags: <defaults>
</compile_context>

<pallas_src>
import functools

import jax
import jax.numpy as jnp
from jax.experimental import pallas as pl
from jax.experimental.pallas import tpu as pltpu


def _vae_kernel(xe_ref,
                w0_ref, b0_ref, w1_ref, b1_ref,
                wml_ref, bml_ref,
                wd0_ref, bd0_ref, wd1_ref, bd1_ref, wd2_ref, bd2_ref,
                out_ref, *, input_dim, latent_dim, out_pad, bf16_acts):
    bf16 = jnp.bfloat16
    f32 = jnp.float32
    act_dt = bf16 if bf16_acts else f32

    xe = xe_ref[...]                      # lane-packed [x | eps]
    x = xe[:, :input_dim]
    eps = xe[:, input_dim:]

    # ---- encoder: Linear -> ReLU -> Linear -> ReLU (bf16 MXU, f32 acc) ----
    h0 = jnp.dot(x.astype(bf16), w0_ref[...], preferred_element_type=f32) + b0_ref[...]
    h0 = jnp.maximum(h0, 0.0).astype(act_dt)
    h1 = jnp.dot(h0.astype(bf16), w1_ref[...], preferred_element_type=f32) + b1_ref[...]
    h1 = jnp.maximum(h1, 0.0).astype(act_dt)

    # ---- fused latent heads: one matmul producing [mu | logvar] (f32) ----
    ml = jnp.dot(h1.astype(bf16), wml_ref[...], preferred_element_type=f32) + bml_ref[...]
    mu = ml[:, :latent_dim]
    logvar = ml[:, latent_dim:]

    # ---- reparameterize: z = mu + eps * exp(0.5 * logvar) (f32 VPU/EUP) ----
    z = mu + eps * jnp.exp(0.5 * logvar)

    # ---- decoder: Linear -> ReLU -> Linear -> ReLU -> Linear -> Sigmoid ----
    d0 = jnp.dot(z.astype(bf16), wd0_ref[...], preferred_element_type=f32) + bd0_ref[...]
    d0 = jnp.maximum(d0, 0.0).astype(act_dt)
    d1 = jnp.dot(d0.astype(bf16), wd1_ref[...], preferred_element_type=f32) + bd1_ref[...]
    d1 = jnp.maximum(d1, 0.0).astype(act_dt)
    logits = jnp.dot(d1.astype(bf16), wd2_ref[...], preferred_element_type=f32) + bd2_ref[...]
    recon = jax.nn.sigmoid(logits)

    # ---- lane-dense packed output slab: [recon | mu | logvar | zero pad] ----
    pieces = [recon, ml]
    if out_pad:
        pieces.append(jnp.zeros((recon.shape[0], out_pad), f32))
    out_ref[...] = jnp.concatenate(pieces, axis=-1)


def _bf16_activations_ok():
    """bf16 elementwise is only a win on chips with a bf16 VPU (v6e / v7x)."""
    try:
        kind = jax.devices()[0].device_kind.lower()
    except Exception:
        return True
    return not any(gen in kind for gen in ("v2", "v3", "v4", "v5"))


def _select_batch_tile(B):
    """Bounded batch tile: <= 512 rows, multiple of 8, >= 2 grid steps when
    the batch allows it (feeds both v7x TensorCores via the parallel axis)."""
    MAX_TB = 512
    if B <= 8:
        return B                      # single full block (sublane-min rows)
    tb = -(-B // 2)                   # ceil(B/2) -> at least 2 grid steps
    tb = -(-tb // 8) * 8              # round up to a sublane multiple
    return min(tb, MAX_TB)


def _vmem_limit_bytes(tb, in_width, out_padded, h0_n, h1_n, weight_bytes, bf16_acts):
    """Rough per-tile VMEM footprint with 2x headroom, clamped to [32, 48] MiB
    (safe on v7x's 64 MiB physical VMEM; raises v5e's 16 MiB default)."""
    MiB = 1024 * 1024
    act = 2 if bf16_acts else 4
    temps = 2 * tb * h0_n * (4 + act)            # h0 / d1 stages: f32 acc + act copy
    temps += 2 * tb * h1_n * (4 + act)           # h1 / d0 stages
    io = 2 * tb * in_width * 4 + 2 * tb * out_padded * 4   # double-buffered I/O tiles
    est = 2 * weight_bytes + temps + io          # weights double-buffered by default
    return int(min(48 * MiB, max(32 * MiB, 2 * est)))


@jax.jit
def quake_vae_forward(x, eps, prepared):
    """Runs the fused VAE forward kernel.

    x:        [B, input_dim] float32
    eps:      [B, latent_dim] float32 (the randn_like sample for reparameterize)
    prepared: dict from prepare_params (bf16 weights, fused mu/logvar head).
    Returns (recon [B, input_dim], mu [B, latent_dim], logvar [B, latent_dim]).
    """
    B, input_dim = x.shape
    latent_dim = eps.shape[1]
    in_width = input_dim + latent_dim
    out_width = input_dim + 2 * latent_dim
    out_padded = -(-out_width // 128) * 128      # lane-dense output store
    out_pad = out_padded - out_width

    bf16_acts = _bf16_activations_ok()

    tb = _select_batch_tile(B)
    grid_b = -(-B // tb)
    B_pad = grid_b * tb

    # Lane-pack [x | eps] into a single input slab; zero-pad the batch so the
    # bounded tile always divides it (padded rows are sliced away below).
    xe = jnp.concatenate([x, eps], axis=-1)
    if B_pad != B:
        xe = jnp.pad(xe, ((0, B_pad - B), (0, 0)))

    p = prepared
    weights = (p["w0"], p["b0"], p["w1"], p["b1"], p["wml"], p["bml"],
               p["wd0"], p["bd0"], p["wd1"], p["bd1"], p["wd2"], p["bd2"])

    def resident_spec(arr):
        # Full-array block with a constant block index => DMA'd once, stays
        # resident in VMEM across all batch tiles.
        return pl.BlockSpec(arr.shape, lambda i: (0, 0))

    in_specs = ([pl.BlockSpec((tb, in_width), lambda i: (i, 0))]
                + [resident_spec(w) for w in weights])
    out_specs = pl.BlockSpec((tb, out_padded), lambda i: (i, 0))

    h0_n = p["w0"].shape[1]
    h1_n = p["w1"].shape[1]
    weight_bytes = sum(int(w.size) * w.dtype.itemsize for w in weights)

    flops = 2 * B_pad * (input_dim * h0_n + h0_n * h1_n + h1_n * 2 * latent_dim
                         + latent_dim * h1_n + h1_n * h0_n + h0_n * input_dim)
    io_bytes = (B_pad * in_width + B_pad * out_padded) * 4
    cost = pl.CostEstimate(
        flops=flops,
        transcendentals=B_pad * (latent_dim + input_dim),   # exp + sigmoid
        bytes_accessed=weight_bytes + io_bytes,
    )

    vmem_limit = _vmem_limit_bytes(tb, in_width, out_padded, h0_n, h1_n,
                                   weight_bytes, bf16_acts)

    out = pl.pallas_call(
        functools.partial(_vae_kernel, input_dim=input_dim, latent_dim=latent_dim,
                          out_pad=out_pad, bf16_acts=bf16_acts),
        out_shape=jax.ShapeDtypeStruct((B_pad, out_padded), jnp.float32),
        grid=(grid_b,),
        in_specs=in_specs,
        out_specs=out_specs,
        compiler_params=pltpu.CompilerParams(
            dimension_semantics=("parallel",),
            vmem_limit_bytes=vmem_limit),
        cost_estimate=cost,
    )(xe, *weights)

    recon = out[:B, :input_dim]
    mu = out[:B, input_dim:input_dim + latent_dim]
    logvar = out[:B, input_dim + latent_dim:out_width]
    return recon, mu, logvar


def init_params(key, input_dim, latent_dim, h0_n=1024, h1_n=256):
    """Deterministic synthetic parameter init (PyTorch-style uniform fan-in).

    Weights are stored [in_features, out_features] in float32; biases [1, out]."""
    def linear(k, fan_in, fan_out):
        kw, kb = jax.random.split(k)
        bound = 1.0 / jnp.sqrt(fan_in)
        w = jax.random.uniform(kw, (fan_in, fan_out), jnp.float32, -bound, bound)
        b = jax.random.uniform(kb, (1, fan_out), jnp.float32, -bound, bound)
        return w, b

    keys = jax.random.split(key, 7)
    w0, b0 = linear(keys[0], input_dim, h0_n)      # encoder[0]
    w1, b1 = linear(keys[1], h0_n, h1_n)           # encoder[2]
    wmu, bmu = linear(keys[2], h1_n, latent_dim)   # enc_mu
    wlv, blv = linear(keys[3], h1_n, latent_dim)   # enc_logvar
    wd0, bd0 = linear(keys[4], latent_dim, h1_n)   # decoder[0]
    wd1, bd1 = linear(keys[5], h1_n, h0_n)         # decoder[2]
    wd2, bd2 = linear(keys[6], h0_n, input_dim)    # decoder[4]
    return dict(w0=w0, b0=b0, w1=w1, b1=b1, wmu=wmu, bmu=bmu, wlv=wlv, blv=blv,
                wd0=wd0, bd0=bd0, wd1=wd1, bd1=bd1, wd2=wd2, bd2=bd2)


def prepare_params(p):
    """One-time preprocessing for the kernel: cast weights to bf16 (halves HBM
    bytes moved) and fuse the mu/logvar heads into a single [h1, 2*latent]
    weight.  Biases stay float32."""
    bf16 = jnp.bfloat16
    return dict(
        w0=p["w0"].astype(bf16), b0=p["b0"],
        w1=p["w1"].astype(bf16), b1=p["b1"],
        wml=jnp.concatenate([p["wmu"], p["wlv"]], axis=1).astype(bf16),
        bml=jnp.concatenate([p["bmu"], p["blv"]], axis=1),
        wd0=p["wd0"].astype(bf16), bd0=p["bd0"],
        wd1=p["wd1"].astype(bf16), bd1=p["bd1"],
        wd2=p["wd2"].astype(bf16), bd2=p["bd2"],
    )


def _reference_forward_f32(x, eps, p):
    """Pure-f32 pure-JAX reference of the PyTorch forward (loose check)."""
    h = jnp.maximum(x @ p["w0"] + p["b0"], 0.0)
    h = jnp.maximum(h @ p["w1"] + p["b1"], 0.0)
    mu = h @ p["wmu"] + p["bmu"]
    logvar = h @ p["wlv"] + p["blv"]
    z = mu + eps * jnp.exp(0.5 * logvar)
    d = jnp.maximum(z @ p["wd0"] + p["bd0"], 0.0)
    d = jnp.maximum(d @ p["wd1"] + p["bd1"], 0.0)
    recon = jax.nn.sigmoid(d @ p["wd2"] + p["bd2"])
    return recon, mu, logvar


def _reference_forward_kernel_math(x, eps, q, latent_dim, bf16_acts):
    """Pure-JAX reference mirroring the kernel's bf16-weight / f32-acc math
    (and bf16 intermediate activations when enabled)."""
    bf16, f32 = jnp.bfloat16, jnp.float32
    act_dt = bf16 if bf16_acts else f32

    def dot(a, w):
        return jnp.dot(a.astype(bf16), w, preferred_element_type=f32)

    h = jnp.maximum(dot(x, q["w0"]) + q["b0"], 0.0).astype(act_dt)
    h = jnp.maximum(dot(h, q["w1"]) + q["b1"], 0.0).astype(act_dt)
    ml = dot(h, q["wml"]) + q["bml"]
    mu, logvar = ml[:, :latent_dim], ml[:, latent_dim:]
    z = mu + eps * jnp.exp(0.5 * logvar)
    d = jnp.maximum(dot(z, q["wd0"]) + q["bd0"], 0.0).astype(act_dt)
    d = jnp.maximum(dot(d, q["wd1"]) + q["bd1"], 0.0).astype(act_dt)
    recon = jax.nn.sigmoid(dot(d, q["wd2"]) + q["bd2"]).astype(f32)
    return recon, mu, logvar


if __name__ == "__main__":
    # Small shapes consistent with the module's forward.
    batch, input_dim, latent_dim = 8, 16, 8
    h0_n, h1_n = 1024, 256

    key = jax.random.PRNGKey(0)
    k_params, k_x, k_eps = jax.random.split(key, 3)

    params = init_params(k_params, input_dim, latent_dim, h0_n, h1_n)
    prepared = prepare_params(params)

    x = jax.random.normal(k_x, (batch, input_dim), jnp.float32)
    # torch.randn_like(stdev) equivalent: epsilon is sampled outside the kernel
    # so the kernel stays deterministic given its inputs.
    eps = jax.random.normal(k_eps, (batch, latent_dim), jnp.float32)

    recon, mu, logvar = quake_vae_forward(x, eps, prepared)
    jax.block_until_ready((recon, mu, logvar))

    assert recon.shape == (batch, input_dim)
    assert mu.shape == (batch, latent_dim) and logvar.shape == (batch, latent_dim)

    # Tight check against a pure-JAX reference using the same bf16 math.
    r_b, m_b, l_b = _reference_forward_kernel_math(
        x, eps, prepared, latent_dim, _bf16_activations_ok())
    assert jnp.allclose(recon, r_b, atol=2e-3, rtol=2e-3)
    assert jnp.allclose(mu, m_b, atol=2e-3, rtol=2e-3)
    assert jnp.allclose(logvar, l_b, atol=2e-3, rtol=2e-3)

    # Loose check against the full-f32 PyTorch-equivalent reference
    # (bf16 weight/activation storage introduces sub-percent rounding).
    r_f, m_f, l_f = _reference_forward_f32(x, eps, params)
    assert jnp.allclose(recon, r_f, atol=5e-2, rtol=5e-2)
    assert jnp.allclose(mu, m_f, atol=5e-2, rtol=5e-2)
    assert jnp.allclose(logvar, l_f, atol=5e-2, rtol=5e-2)

    print("KERNEL_OK")
</pallas_src>

<mosaic_0001>
module attributes {stable_mosaic.version = 11 : i64} {
  func.func @_vae_kernel(%arg0: i32, %arg1: memref<8x24xf32, #tpu.memory_space<vmem>>, %arg2: memref<16x1024xbf16, #tpu.memory_space<vmem>>, %arg3: memref<1x1024xf32, #tpu.memory_space<vmem>>, %arg4: memref<1024x256xbf16, #tpu.memory_space<vmem>>, %arg5: memref<1x256xf32, #tpu.memory_space<vmem>>, %arg6: memref<256x16xbf16, #tpu.memory_space<vmem>>, %arg7: memref<1x16xf32, #tpu.memory_space<vmem>>, %arg8: memref<8x256xbf16, #tpu.memory_space<vmem>>, %arg9: memref<1x256xf32, #tpu.memory_space<vmem>>, %arg10: memref<256x1024xbf16, #tpu.memory_space<vmem>>, %arg11: memref<1x1024xf32, #tpu.memory_space<vmem>>, %arg12: memref<1024x16xbf16, #tpu.memory_space<vmem>>, %arg13: memref<1x16xf32, #tpu.memory_space<vmem>>, %arg14: memref<8x128xf32, #tpu.memory_space<vmem>>) attributes {dimension_semantics = [#tpu.dimension_semantics<parallel>], iteration_bounds = array<i64: 1>, scalar_prefetch = 0 : i64, scratch_operands = 0 : i64, tpu.core_type = #tpu.core_type<tc>, window_params = [{transform_indices = @transform_0, window_bounds = array<i64: 8, 24>}, {pipeline_mode = #tpu.pipeline_mode<synchronous>, transform_indices = @transform_1, window_bounds = array<i64: 16, 1024>}, {pipeline_mode = #tpu.pipeline_mode<synchronous>, transform_indices = @transform_2, window_bounds = array<i64: 1, 1024>}, {pipeline_mode = #tpu.pipeline_mode<synchronous>, transform_indices = @transform_3, window_bounds = array<i64: 1024, 256>}, {pipeline_mode = #tpu.pipeline_mode<synchronous>, transform_indices = @transform_4, window_bounds = array<i64: 1, 256>}, {pipeline_mode = #tpu.pipeline_mode<synchronous>, transform_indices = @transform_5, window_bounds = array<i64: 256, 16>}, {pipeline_mode = #tpu.pipeline_mode<synchronous>, transform_indices = @transform_6, window_bounds = array<i64: 1, 16>}, {pipeline_mode = #tpu.pipeline_mode<synchronous>, transform_indices = @transform_7, window_bounds = array<i64: 8, 256>}, {pipeline_mode = #tpu.pipeline_mode<synchronous>, transform_indices = @transform_8, window_bounds = array<i64: 1, 256>}, {pipeline_mode = #tpu.pipeline_mode<synchronous>, transform_indices = @transform_9, window_bounds = array<i64: 256, 1024>}, {pipeline_mode = #tpu.pipeline_mode<synchronous>, transform_indices = @transform_10, window_bounds = array<i64: 1, 1024>}, {pipeline_mode = #tpu.pipeline_mode<synchronous>, transform_indices = @transform_11, window_bounds = array<i64: 1024, 16>}, {pipeline_mode = #tpu.pipeline_mode<synchronous>, transform_indices = @transform_12, window_bounds = array<i64: 1, 16>}, {transform_indices = @transform_13, window_bounds = array<i64: 8, 128>}]} {
    %c0 = arith.constant 0 : index
    %c0_0 = arith.constant 0 : index
    %0 = vector.load %arg1[%c0, %c0_0] : memref<8x24xf32, #tpu.memory_space<vmem>>, vector<8x24xf32>
    %1 = vector.extract_strided_slice %0 {offsets = [0, 0], sizes = [8, 16], strides = [1, 1]} : vector<8x24xf32> to vector<8x16xf32>
    %2 = vector.extract_strided_slice %0 {offsets = [0, 16], sizes = [8, 8], strides = [1, 1]} : vector<8x24xf32> to vector<8x8xf32>
    %3 = arith.truncf %1 : vector<8x16xf32> to vector<8x16xbf16>
    %c0_1 = arith.constant 0 : index
    %c0_2 = arith.constant 0 : index
    %4 = vector.load %arg2[%c0_1, %c0_2] : memref<16x1024xbf16, #tpu.memory_space<vmem>>, vector<16x1024xbf16>
    %cst = arith.constant dense<0.000000e+00> : vector<8x1024xf32>
    %5 = tpu.matmul %3, %4, %cst {dimension_numbers = #tpu.dot_dimension_numbers<[1], [0], [0], [1], [0, 0, 1, 1], [], []>} : vector<8x16xbf16>, vector<16x1024xbf16>, vector<8x1024xf32> -> vector<8x1024xf32>
    %c0_3 = arith.constant 0 : index
    %c0_4 = arith.constant 0 : index
    %6 = vector.load %arg3[%c0_3, %c0_4] : memref<1x1024xf32, #tpu.memory_space<vmem>>, vector<1x1024xf32>
    %7 = vector.broadcast %6 : vector<1x1024xf32> to vector<8x1024xf32>
    %8 = arith.addf %5, %7 : vector<8x1024xf32>
    %cst_5 = arith.constant 0.000000e+00 : f32
    %9 = vector.broadcast %cst_5 : f32 to vector<8x1024xf32>
    %10 = arith.maximumf %8, %9 : vector<8x1024xf32>
    %11 = arith.truncf %10 : vector<8x1024xf32> to vector<8x1024xbf16>
    %c0_6 = arith.constant 0 : index
    %c0_7 = arith.constant 0 : index
    %12 = vector.load %arg4[%c0_6, %c0_7] : memref<1024x256xbf16, #tpu.memory_space<vmem>>, vector<1024x256xbf16>
    %cst_8 = arith.constant dense<0.000000e+00> : vector<8x256xf32>
    %13 = tpu.matmul %11, %12, %cst_8 {dimension_numbers = #tpu.dot_dimension_numbers<[1], [0], [0], [1], [0, 0, 1, 1], [], []>} : vector<8x1024xbf16>, vector<1024x256xbf16>, vector<8x256xf32> -> vector<8x256xf32>
    %c0_9 = arith.constant 0 : index
    %c0_10 = arith.constant 0 : index
    %14 = vector.load %arg5[%c0_9, %c0_10] : memref<1x256xf32, #tpu.memory_space<vmem>>, vector<1x256xf32>
    %15 = vector.broadcast %14 : vector<1x256xf32> to vector<8x256xf32>
    %16 = arith.addf %13, %15 : vector<8x256xf32>
    %cst_11 = arith.constant 0.000000e+00 : f32
    %17 = vector.broadcast %cst_11 : f32 to vector<8x256xf32>
    %18 = arith.maximumf %16, %17 : vector<8x256xf32>
    %19 = arith.truncf %18 : vector<8x256xf32> to vector<8x256xbf16>
    %c0_12 = arith.constant 0 : index
    %c0_13 = arith.constant 0 : index
    %20 = vector.load %arg6[%c0_12, %c0_13] : memref<256x16xbf16, #tpu.memory_space<vmem>>, vector<256x16xbf16>
    %cst_14 = arith.constant dense<0.000000e+00> : vector<8x16xf32>
    %21 = tpu.matmul %19, %20, %cst_14 {dimension_numbers = #tpu.dot_dimension_numbers<[1], [0], [0], [1], [0, 0, 1, 1], [], []>} : vector<8x256xbf16>, vector<256x16xbf16>, vector<8x16xf32> -> vector<8x16xf32>
    %c0_15 = arith.constant 0 : index
    %c0_16 = arith.constant 0 : index
    %22 = vector.load %arg7[%c0_15, %c0_16] : memref<1x16xf32, #tpu.memory_space<vmem>>, vector<1x16xf32>
    %23 = vector.broadcast %22 : vector<1x16xf32> to vector<8x16xf32>
    %24 = arith.addf %21, %23 : vector<8x16xf32>
    %25 = vector.extract_strided_slice %24 {offsets = [0, 0], sizes = [8, 8], strides = [1, 1]} : vector<8x16xf32> to vector<8x8xf32>
    %26 = vector.extract_strided_slice %24 {offsets = [0, 8], sizes = [8, 8], strides = [1, 1]} : vector<8x16xf32> to vector<8x8xf32>
    %cst_17 = arith.constant 5.000000e-01 : f32
    %27 = vector.broadcast %cst_17 : f32 to vector<8x8xf32>
    %28 = arith.mulf %27, %26 : vector<8x8xf32>
    %29 = math.exp %28 : vector<8x8xf32>
    %30 = arith.mulf %2, %29 : vector<8x8xf32>
    %31 = arith.addf %25, %30 : vector<8x8xf32>
    %32 = arith.truncf %31 : vector<8x8xf32> to vector<8x8xbf16>
    %c0_18 = arith.constant 0 : index
    %c0_19 = arith.constant 0 : index
    %33 = vector.load %arg8[%c0_18, %c0_19] : memref<8x256xbf16, #tpu.memory_space<vmem>>, vector<8x256xbf16>
    %cst_20 = arith.constant dense<0.000000e+00> : vector<8x256xf32>
    %34 = tpu.matmul %32, %33, %cst_20 {dimension_numbers = #tpu.dot_dimension_numbers<[1], [0], [0], [1], [0, 0, 1, 1], [], []>} : vector<8x8xbf16>, vector<8x256xbf16>, vector<8x256xf32> -> vector<8x256xf32>
    %c0_21 = arith.constant 0 : index
    %c0_22 = arith.constant 0 : index
    %35 = vector.load %arg9[%c0_21, %c0_22] : memref<1x256xf32, #tpu.memory_space<vmem>>, vector<1x256xf32>
    %36 = vector.broadcast %35 : vector<1x256xf32> to vector<8x256xf32>
    %37 = arith.addf %34, %36 : vector<8x256xf32>
    %cst_23 = arith.constant 0.000000e+00 : f32
    %38 = vector.broadcast %cst_23 : f32 to vector<8x256xf32>
    %39 = arith.maximumf %37, %38 : vector<8x256xf32>
    %40 = arith.truncf %39 : vector<8x256xf32> to vector<8x256xbf16>
    %c0_24 = arith.constant 0 : index
    %c0_25 = arith.constant 0 : index
    %41 = vector.load %arg10[%c0_24, %c0_25] : memref<256x1024xbf16, #tpu.memory_space<vmem>>, vector<256x1024xbf16>
    %cst_26 = arith.constant dense<0.000000e+00> : vector<8x1024xf32>
    %42 = tpu.matmul %40, %41, %cst_26 {dimension_numbers = #tpu.dot_dimension_numbers<[1], [0], [0], [1], [0, 0, 1, 1], [], []>} : vector<8x256xbf16>, vector<256x1024xbf16>, vector<8x1024xf32> -> vector<8x1024xf32>
    %c0_27 = arith.constant 0 : index
    %c0_28 = arith.constant 0 : index
    %43 = vector.load %arg11[%c0_27, %c0_28] : memref<1x1024xf32, #tpu.memory_space<vmem>>, vector<1x1024xf32>
    %44 = vector.broadcast %43 : vector<1x1024xf32> to vector<8x1024xf32>
    %45 = arith.addf %42, %44 : vector<8x1024xf32>
    %cst_29 = arith.constant 0.000000e+00 : f32
    %46 = vector.broadcast %cst_29 : f32 to vector<8x1024xf32>
    %47 = arith.maximumf %45, %46 : vector<8x1024xf32>
    %48 = arith.truncf %47 : vector<8x1024xf32> to vector<8x1024xbf16>
    %c0_30 = arith.constant 0 : index
    %c0_31 = arith.constant 0 : index
    %49 = vector.load %arg12[%c0_30, %c0_31] : memref<1024x16xbf16, #tpu.memory_space<vmem>>, vector<1024x16xbf16>
    %cst_32 = arith.constant dense<0.000000e+00> : vector<8x16xf32>
    %50 = tpu.matmul %48, %49, %cst_32 {dimension_numbers = #tpu.dot_dimension_numbers<[1], [0], [0], [1], [0, 0, 1, 1], [], []>} : vector<8x1024xbf16>, vector<1024x16xbf16>, vector<8x16xf32> -> vector<8x16xf32>
    %c0_33 = arith.constant 0 : index
    %c0_34 = arith.constant 0 : index
    %51 = vector.load %arg13[%c0_33, %c0_34] : memref<1x16xf32, #tpu.memory_space<vmem>>, vector<1x16xf32>
    %52 = vector.broadcast %51 : vector<1x16xf32> to vector<8x16xf32>
    %53 = arith.addf %50, %52 : vector<8x16xf32>
    %54 = arith.negf %53 : vector<8x16xf32>
    %55 = math.exp %54 : vector<8x16xf32>
    %cst_35 = arith.constant 1.000000e+00 : f32
    %56 = vector.broadcast %cst_35 : f32 to vector<8x16xf32>
    %57 = arith.addf %56, %55 : vector<8x16xf32>
    %58 = arith.divf %56, %57 : vector<8x16xf32>
    %cst_36 = arith.constant 0.000000e+00 : f32
    %59 = vector.broadcast %cst_36 : f32 to vector<8x96xf32>
    %60 = tpu.concatenate %58, %24, %59 in 1 : vector<8x16xf32>, vector<8x16xf32>, vector<8x96xf32> -> vector<8x128xf32>
    %c0_37 = arith.constant 0 : index
    %c0_38 = arith.constant 0 : index
    %61 = vector.load %arg14[%c0_37, %c0_38] : memref<8x128xf32, #tpu.memory_space<vmem>>, vector<8x128xf32>
    tpu.vector_store %arg14[%c0_37, %c0_38], %60 {strides = array<i32>} : memref<8x128xf32, #tpu.memory_space<vmem>>, vector<8x128xf32>,
    return
  }
  func.func @transform_0(%arg0: i32) -> (i32, i32) {
    %c0_i32 = arith.constant 0 : i32
    %c0_i32_0 = arith.constant 0 : i32
    return %arg0, %c0_i32 : i32, i32
  }
  func.func @transform_1(%arg0: i32) -> (i32, i32) {
    %c0_i32 = arith.constant 0 : i32
    %c0_i32_0 = arith.constant 0 : i32
    %c0_i32_1 = arith.constant 0 : i32
    return %c0_i32, %c0_i32_0 : i32, i32
  }
  func.func @transform_2(%arg0: i32) -> (i32, i32) {
    %c0_i32 = arith.constant 0 : i32
    %c0_i32_0 = arith.constant 0 : i32
    %c0_i32_1 = arith.constant 0 : i32
    return %c0_i32, %c0_i32_0 : i32, i32
  }
  func.func @transform_3(%arg0: i32) -> (i32, i32) {
    %c0_i32 = arith.constant 0 : i32
    %c0_i32_0 = arith.constant 0 : i32
    %c0_i32_1 = arith.constant 0 : i32
    return %c0_i32, %c0_i32_0 : i32, i32
  }
  func.func @transform_4(%arg0: i32) -> (i32, i32) {
    %c0_i32 = arith.constant 0 : i32
    %c0_i32_0 = arith.constant 0 : i32
    %c0_i32_1 = arith.constant 0 : i32
    return %c0_i32, %c0_i32_0 : i32, i32
  }
  func.func @transform_5(%arg0: i32) -> (i32, i32) {
    %c0_i32 = arith.constant 0 : i32
    %c0_i32_0 = arith.constant 0 : i32
    %c0_i32_1 = arith.constant 0 : i32
    return %c0_i32, %c0_i32_0 : i32, i32
  }
  func.func @transform_6(%arg0: i32) -> (i32, i32) {
    %c0_i32 = arith.constant 0 : i32
    %c0_i32_0 = arith.constant 0 : i32
    %c0_i32_1 = arith.constant 0 : i32
    return %c0_i32, %c0_i32_0 : i32, i32
  }
  func.func @transform_7(%arg0: i32) -> (i32, i32) {
    %c0_i32 = arith.constant 0 : i32
    %c0_i32_0 = arith.constant 0 : i32
    %c0_i32_1 = arith.constant 0 : i32
    return %c0_i32, %c0_i32_0 : i32, i32
  }
  func.func @transform_8(%arg0: i32) -> (i32, i32) {
    %c0_i32 = arith.constant 0 : i32
    %c0_i32_0 = arith.constant 0 : i32
    %c0_i32_1 = arith.constant 0 : i32
    return %c0_i32, %c0_i32_0 : i32, i32
  }
  func.func @transform_9(%arg0: i32) -> (i32, i32) {
    %c0_i32 = arith.constant 0 : i32
    %c0_i32_0 = arith.constant 0 : i32
    %c0_i32_1 = arith.constant 0 : i32
    return %c0_i32, %c0_i32_0 : i32, i32
  }
  func.func @transform_10(%arg0: i32) -> (i32, i32) {
    %c0_i32 = arith.constant 0 : i32
    %c0_i32_0 = arith.constant 0 : i32
    %c0_i32_1 = arith.constant 0 : i32
    return %c0_i32, %c0_i32_0 : i32, i32
  }
  func.func @transform_11(%arg0: i32) -> (i32, i32) {
    %c0_i32 = arith.constant 0 : i32
    %c0_i32_0 = arith.constant 0 : i32
    %c0_i32_1 = arith.constant 0 : i32
    return %c0_i32, %c0_i32_0 : i32, i32
  }
  func.func @transform_12(%arg0: i32) -> (i32, i32) {
    %c0_i32 = arith.constant 0 : i32
    %c0_i32_0 = arith.constant 0 : i32
    %c0_i32_1 = arith.constant 0 : i32
    return %c0_i32, %c0_i32_0 : i32, i32
  }
  func.func @transform_13(%arg0: i32) -> (i32, i32) {
    %c0_i32 = arith.constant 0 : i32
    %c0_i32_0 = arith.constant 0 : i32
    return %arg0, %c0_i32 : i32, i32
  }
}

</mosaic_0001>

<llo_original>
// kernel: quake_vae_forward.1
$region0: #{quake_vae_forward.1}
  #allocation0 [shape = 'u32[]', space=smem, size = 0x4, offset = 0x4, fixed_abs, tag = 'smem constant byte address 0x4 - core index']
  #allocation1 [shape = 'u32[144,128]{1,0:T(1,128)}', space=vmem, size = 0x12000, scoped, tag = 'internal scratch']
  %s0 = inlined_call_operand.vmem [shape: f32[8,24], index: 0, kind: input, shape index: {}]
  %s1 = inlined_call_operand.vmem [shape: bf16[16,1024], index: 1, kind: input, shape index: {}]
  %s2 = inlined_call_operand.vmem [shape: f32[1,1024], index: 2, kind: input, shape index: {}]
  %s3 = inlined_call_operand.hbm [shape: bf16[1024,256], index: 3, kind: input, shape index: {}]
  %s4 = inlined_call_operand.vmem [shape: f32[1,256], index: 4, kind: input, shape index: {}]
  %s5 = inlined_call_operand.vmem [shape: bf16[256,16], index: 5, kind: input, shape index: {}]
  %s6 = inlined_call_operand.vmem [shape: f32[1,16], index: 6, kind: input, shape index: {}]
  %s7 = inlined_call_operand.vmem [shape: bf16[8,256], index: 7, kind: input, shape index: {}]
  %s8 = inlined_call_operand.vmem [shape: f32[1,256], index: 8, kind: input, shape index: {}]
  %s9 = inlined_call_operand.hbm [shape: bf16[256,1024], index: 9, kind: input, shape index: {}]
  %s10 = inlined_call_operand.vmem [shape: f32[1,1024], index: 10, kind: input, shape index: {}]
  %s11 = inlined_call_operand.vmem [shape: bf16[1024,16], index: 11, kind: input, shape index: {}]
  %s12 = inlined_call_operand.vmem [shape: f32[1,16], index: 12, kind: input, shape index: {}]
  %s13 = inlined_call_operand.vmem [shape: f32[8,128], index: 13, kind: output, shape index: {}]
  %s14 = sld [smem:[#allocation0]]
  $region70: #{quake_vae_forward.1} parent=0
    _
  %s16 = ssub.s32 1, %s14
  %s17 = scalar_select 0, %s16, %s14
  $region1: #{quake_vae_forward.1} parent=0
    #allocation2 [shape = 'u8[524288]{0}', space=vmem, size = 0x80000, scoped, tag = 'input window, operand 3, single buffered']
    #allocation3 [shape = 's32[1]{0}', space=sflag, size = 0x4, scoped, tag = 'scoped memory for quake_vae_forward.1']
    #allocation4 [shape = 'u8[524288]{0}', space=vmem, size = 0x80000, scoped, tag = 'input window, operand 9, single buffered']
    #allocation5 [shape = 's32[1]{0}', space=sflag, size = 0x4, scoped, tag = 'scoped memory for quake_vae_forward.1']
    %18 = vsyncpa [#allocation3], 0
    %19 = vsyncpa [#allocation5], 0
    // Predicated region
    $region2: #{quake_vae_forward.1} parent=1 // pred_check
      _
    $region3: #{quake_vae_forward.1} parent=1 // pred_check_branch
      %21 = sbr.rel (0) target = $region5
    $region4: #{quake_vae_forward.1} parent=1 // pred_region
      _
    $region5: #{quake_vae_forward.1} parent=1 // pred_fallthru
      _
    // Predicated region
    $region6: #{quake_vae_forward.1} parent=1 // pred_check
      _
    $region7: #{quake_vae_forward.1} parent=1 // pred_check_branch
      %23 = sbr.rel (0) target = $region9
    $region8: #{quake_vae_forward.1} parent=1 // pred_region
      _
    $region9: #{quake_vae_forward.1} parent=1 // pred_fallthru
      _
    // Predicated region
    $region10: #{quake_vae_forward.1} parent=1 // pred_check
      _
    $region11: #{quake_vae_forward.1} parent=1 // pred_check_branch
      %25 = sbr.rel (0) target = $region13
    $region12: #{quake_vae_forward.1} parent=1 // pred_region
      _
    $region13: #{quake_vae_forward.1} parent=1 // pred_fallthru
      _
    // Predicated region
    $region14: #{quake_vae_forward.1} parent=1 // pred_check
      _
    $region15: #{quake_vae_forward.1} parent=1 // pred_check_branch
      %27 = sbr.rel (0) target = $region17
    $region16: #{quake_vae_forward.1} parent=1 // pred_region
      %s29 = ssub.s32 16384, 16384
      %30 = vsyncadd [#allocation3], %s29
      %s31 = sshll.u32 [#allocation2], 4
      %s32 = int_to_ptr.vmem [resolvable:$true] %s31
      %37 = dma.hbm_to_vmem [thread:$0]  %s3, 16384, %s32, [#allocation3], 128, 128, 8
    $region17: #{quake_vae_forward.1} parent=1 // pred_fallthru
      _
    // Predicated region
    $region18: #{quake_vae_forward.1} parent=1 // pred_check
      _
    $region19: #{quake_vae_forward.1} parent=1 // pred_check_branch
      %39 = sbr.rel (0) target = $region21
    $region20: #{quake_vae_forward.1} parent=1 // pred_region
      _
    $region21: #{quake_vae_forward.1} parent=1 // pred_fallthru
      _
    // Predicated region
    $region22: #{quake_vae_forward.1} parent=1 // pred_check
      _
    $region23: #{quake_vae_forward.1} parent=1 // pred_check_branch
      %41 = sbr.rel (0) target = $region25
    $region24: #{quake_vae_forward.1} parent=1 // pred_region
      _
    $region25: #{quake_vae_forward.1} parent=1 // pred_fallthru
      _
    // Predicated region
    $region26: #{quake_vae_forward.1} parent=1 // pred_check
      _
    $region27: #{quake_vae_forward.1} parent=1 // pred_check_branch
      %43 = sbr.rel (0) target = $region29
    $region28: #{quake_vae_forward.1} parent=1 // pred_region
      _
    $region29: #{quake_vae_forward.1} parent=1 // pred_fallthru
      _
    // Predicated region
    $region30: #{quake_vae_forward.1} parent=1 // pred_check
      _
    $region31: #{quake_vae_forward.1} parent=1 // pred_check_branch
      %45 = sbr.rel (0) target = $region33
    $region32: #{quake_vae_forward.1} parent=1 // pred_region
      _
    $region33: #{quake_vae_forward.1} parent=1 // pred_fallthru
      _
    // Predicated region
    $region34: #{quake_vae_forward.1} parent=1 // pred_check
      _
    $region35: #{quake_vae_forward.1} parent=1 // pred_check_branch
      %47 = sbr.rel (0) target = $region37
    $region36: #{quake_vae_forward.1} parent=1 // pred_region
      _
    $region37: #{quake_vae_forward.1} parent=1 // pred_fallthru
      _
    // Predicated region
    $region38: #{quake_vae_forward.1} parent=1 // pred_check
      _
    $region39: #{quake_vae_forward.1} parent=1 // pred_check_branch
      %49 = sbr.rel (0) target = $region41
    $region40: #{quake_vae_forward.1} parent=1 // pred_region
      %s51 = ssub.s32 16384, 16384
      %52 = vsyncadd [#allocation5], %s51
      %s53 = sshll.u32 [#allocation4], 4
      %s54 = int_to_ptr.vmem [resolvable:$true] %s53
      %59 = dma.hbm_to_vmem [thread:$0]  %s9, 16384, %s54, [#allocation5], 512, 512, 32
    $region41: #{quake_vae_forward.1} parent=1 // pred_fallthru
      _
    // Predicated region
    $region42: #{quake_vae_forward.1} parent=1 // pred_check
      _
    $region43: #{quake_vae_forward.1} parent=1 // pred_check_branch
      %61 = sbr.rel (0) target = $region45
    $region44: #{quake_vae_forward.1} parent=1 // pred_region
      _
    $region45: #{quake_vae_forward.1} parent=1 // pred_fallthru
      _
    // Predicated region
    $region46: #{quake_vae_forward.1} parent=1 // pred_check
      _
    $region47: #{quake_vae_forward.1} parent=1 // pred_check_branch
      %63 = sbr.rel (0) target = $region49
    $region48: #{quake_vae_forward.1} parent=1 // pred_region
      _
    $region49: #{quake_vae_forward.1} parent=1 // pred_fallthru
      _
    // Predicated region
    $region50: #{quake_vae_forward.1} parent=1 // pred_check
      _
    $region51: #{quake_vae_forward.1} parent=1 // pred_check_branch
      %65 = sbr.rel (0) target = $region53
    $region52: #{quake_vae_forward.1} parent=1 // pred_region
      _
    $region53: #{quake_vae_forward.1} parent=1 // pred_fallthru
      _
    // Predicated region
    $region54: #{quake_vae_forward.1} parent=1 // pred_check
      _
    $region55: #{quake_vae_forward.1} parent=1 // pred_check_branch
      %67 = sbr.rel (0) target = $region57
    $region56: #{quake_vae_forward.1} parent=1 // pred_region
      %68 = dma.done [#allocation3], 16384
    $region57: #{quake_vae_forward.1} parent=1 // pred_fallthru
      _
    // Predicated region
    $region58: #{quake_vae_forward.1} parent=1 // pred_check
      _
    $region59: #{quake_vae_forward.1} parent=1 // pred_check_branch
      %70 = sbr.rel (0) target = $region61
    $region60: #{quake_vae_forward.1} parent=1 // pred_region
      %71 = dma.done [#allocation5], 16384
    $region61: #{quake_vae_forward.1} parent=1 // pred_fallthru
      _
    %v73 = vld [vmem:[%s0] sm:$0xff]
    %v74 = vpack.c.bf16 %v73, %v73
    %v75 = vld [vmem:[%s1] sm:$0xff]
    %v76 = vld [vmem:[%s1 + $0x8] sm:$0xff]
    %v77 = vld [vmem:[%s1 + $0x10] sm:$0xff]
    %v78 = vld [vmem:[%s1 + $0x18] sm:$0xff]
    %v79 = vld [vmem:[%s1 + $0x20] sm:$0xff]
    %v80 = vld [vmem:[%s1 + $0x28] sm:$0xff]
    %v81 = vld [vmem:[%s1 + $0x30] sm:$0xff]
    %v82 = vld [vmem:[%s1 + $0x38] sm:$0xff]
    %v83 = vld [vmem:[%s2] sm:$0xff]
    %v85 = vlaneseq
    %v86 = vshrl.u32 %v85, 7
    %v87 = vsub.s32 0, %v86
    %v88 = vrot.slane %v83, %v87
    %v89 = vlaneseq
    %v90 = vshrl.u32 %v89, 7
    %v91 = vsub.s32 1, %v90
    %v92 = vrot.slane %v83, %v91
    %v93 = vlaneseq
    %v94 = vshrl.u32 %v93, 7
    %v95 = vsub.s32 2, %v94
    %v96 = vrot.slane %v83, %v95
    %v97 = vlaneseq
    %v98 = vshrl.u32 %v97, 7
    %v99 = vsub.s32 3, %v98
    %v100 = vrot.slane %v83, %v99
    %v101 = vlaneseq
    %v102 = vshrl.u32 %v101, 7
    %v103 = vsub.s32 4, %v102
    %v104 = vrot.slane %v83, %v103
    %v105 = vlaneseq
    %v106 = vshrl.u32 %v105, 7
    %v107 = vsub.s32 5, %v106
    %v108 = vrot.slane %v83, %v107
    %v109 = vlaneseq
    %v110 = vshrl.u32 %v109, 7
    %v111 = vsub.s32 6, %v110
    %v112 = vrot.slane %v83, %v111
    %v113 = vlaneseq
    %v114 = vshrl.u32 %v113, 7
    %v115 = vsub.s32 7, %v114
    %v116 = vrot.slane %v83, %v115
    %v133 = vunpack.c.l.b16 %v75
    %v134 = vunpack.c.h.b16 %v75
    %v135 = vunpack.c.l.b16 %v76
    %v136 = vunpack.c.h.b16 %v76
    %v137 = vunpack.c.l.b16 %v77
    %v138 = vunpack.c.h.b16 %v77
    %v139 = vunpack.c.l.b16 %v78
    %v140 = vunpack.c.h.b16 %v78
    %v141 = vunpack.c.l.b16 %v79
    %v142 = vunpack.c.h.b16 %v79
    %v143 = vunpack.c.l.b16 %v80
    %v144 = vunpack.c.h.b16 %v80
    %v145 = vunpack.c.l.b16 %v81
    %v146 = vunpack.c.h.b16 %v81
    %v147 = vunpack.c.l.b16 %v82
    %v148 = vunpack.c.h.b16 %v82
    %v149 = vpack.c.b16 %v141, %v133
    %v150 = vpack.c.b16 %v142, %v134
    %v151 = vpack.c.b16 %v143, %v135
    %v152 = vpack.c.b16 %v144, %v136
    %v153 = vpack.c.b16 %v145, %v137
    %v154 = vpack.c.b16 %v146, %v138
    %v155 = vpack.c.b16 %v147, %v139
    %v156 = vpack.c.b16 %v148, %v140
    %vm165 = vcmask 130048
    %v167 = vsel %vm165, %v74, 0
    %169 = vmatprep.subr.bf16.mxu0 %v150
    %170 = vmatpush1.bf16.msra.mxu0 %v149
    %171 = vmatprep.subr.bf16.mxu0 0
    %172 = vmatpush1.bf16.msra.mxu0 0
    %173 = vmatprep.subr.bf16.mxu0 0
    %174 = vmatpush1.bf16.msra.mxu0 0
    %175 = vmatprep.subr.bf16.mxu0 0
    %176 = vmatpush1.bf16.msra.mxu0 0
    %177 = vmatprep.subr.bf16.mxu0 0
    %178 = vmatpush1.bf16.msra.mxu0 0
    %179 = vmatprep.subr.bf16.mxu0 0
    %180 = vmatpush1.bf16.msra.mxu0 0
    %181 = vmatprep.subr.bf16.mxu0 0
    %182 = vmatpush1.bf16.msra.mxu0 0
    %183 = vmatprep.subr.bf16.mxu0 0
    %184 = vmatpush1.bf16.msra.mxu0 0
    %185 = vmatprep.subr.bf16.mxu0 0
    %186 = vmatpush1.bf16.msra.mxu0 0
    %187 = vmatprep.subr.bf16.mxu0 0
    %188 = vmatpush1.bf16.msra.mxu0 0
    %189 = vmatprep.subr.bf16.mxu0 0
    %190 = vmatpush1.bf16.msra.mxu0 0
    %191 = vmatprep.subr.bf16.mxu0 0
    %192 = vmatpush1.bf16.msra.mxu0 0
    %193 = vmatprep.subr.bf16.mxu0 0
    %194 = vmatpush1.bf16.msra.mxu0 0
    %195 = vmatprep.subr.bf16.mxu0 0
    %196 = vmatpush1.bf16.msra.mxu0 0
    %197 = vmatprep.subr.bf16.mxu0 0
    %198 = vmatpush1.bf16.msra.mxu0 0
    %199 = vmatprep.subr.bf16.mxu0 0
    %200 = vmatpush1.bf16.msra.mxu0 0
    %201 = vmatprep.mubr.bf16.mxu0 0
    %202 = vmatmul.mubr.bf16.gmra.mrb[0].mxu0 %v167
    %v203 = vpop.f32.mrb[0].mxu0
    %v204 = vadd.f32 %v88, %v203
    %v205 = vpop.f32.mrb[0].mxu0
    %v206 = vadd.f32 %v92, %v205
    %v207 = vpop.f32.mrb[0].mxu0
    %v208 = vpop.f32.mrb[0].mxu0
    %209 = vdwg.mxu0
    %210 = vmatprep.subr.bf16.mxu0 %v152
    %211 = vmatpush1.bf16.msra.mxu0 %v151
    %212 = vmatprep.subr.bf16.mxu0 0
    %213 = vmatpush1.bf16.msra.mxu0 0
    %214 = vmatprep.subr.bf16.mxu0 0
    %215 = vmatpush1.bf16.msra.mxu0 0
    %216 = vmatprep.subr.bf16.mxu0 0
    %217 = vmatpush1.bf16.msra.mxu0 0
    %218 = vmatprep.subr.bf16.mxu0 0
    %219 = vmatpush1.bf16.msra.mxu0 0
    %220 = vmatprep.subr.bf16.mxu0 0
    %221 = vmatpush1.bf16.msra.mxu0 0
    %222 = vmatprep.subr.bf16.mxu0 0
    %223 = vmatpush1.bf16.msra.mxu0 0
    %224 = vmatprep.subr.bf16.mxu0 0
    %225 = vmatpush1.bf16.msra.mxu0 0
    %226 = vmatprep.subr.bf16.mxu0 0
    %227 = vmatpush1.bf16.msra.mxu0 0
    %228 = vmatprep.subr.bf16.mxu0 0
    %229 = vmatpush1.bf16.msra.mxu0 0
    %230 = vmatprep.subr.bf16.mxu0 0
    %231 = vmatpush1.bf16.msra.mxu0 0
    %232 = vmatprep.subr.bf16.mxu0 0
    %233 = vmatpush1.bf16.msra.mxu0 0
    %234 = vmatprep.subr.bf16.mxu0 0
    %235 = vmatpush1.bf16.msra.mxu0 0
    %236 = vmatprep.subr.bf16.mxu0 0
    %237 = vmatpush1.bf16.msra.mxu0 0
    %238 = vmatprep.subr.bf16.mxu0 0
    %239 = vmatpush1.bf16.msra.mxu0 0
    %240 = vmatprep.subr.bf16.mxu0 0
    %241 = vmatpush1.bf16.msra.mxu0 0
    %242 = vmatprep.mubr.bf16.mxu0 0
    %243 = vmatmul.mubr.bf16.gmra.mrb[0].mxu0 %v167
    %v244 = vpop.f32.mrb[0].mxu0
    %v245 = vadd.f32 %v96, %v244
    %v246 = vpop.f32.mrb[0].mxu0
    %v247 = vadd.f32 %v100, %v246
    %v248 = vpop.f32.mrb[0].mxu0
    %v249 = vpop.f32.mrb[0].mxu0
    %250 = vdwg.mxu0
    %251 = vmatprep.subr.bf16.mxu0 %v154
    %252 = vmatpush1.bf16.msra.mxu0 %v153
    %253 = vmatprep.subr.bf16.mxu0 0
    %254 = vmatpush1.bf16.msra.mxu0 0
    %255 = vmatprep.subr.bf16.mxu0 0
    %256 = vmatpush1.bf16.msra.mxu0 0
    %257 = vmatprep.subr.bf16.mxu0 0
    %258 = vmatpush1.bf16.msra.mxu0 0
    %259 = vmatprep.subr.bf16.mxu0 0
    %260 = vmatpush1.bf16.msra.mxu0 0
    %261 = vmatprep.subr.bf16.mxu0 0
    %262 = vmatpush1.bf16.msra.mxu0 0
    %263 = vmatprep.subr.bf16.mxu0 0
    %264 = vmatpush1.bf16.msra.mxu0 0
    %265 = vmatprep.subr.bf16.mxu0 0
    %266 = vmatpush1.bf16.msra.mxu0 0
    %267 = vmatprep.subr.bf16.mxu0 0
    %268 = vmatpush1.bf16.msra.mxu0 0
    %269 = vmatprep.subr.bf16.mxu0 0
    %270 = vmatpush1.bf16.msra.mxu0 0
    %271 = vmatprep.subr.bf16.mxu0 0
    %272 = vmatpush1.bf16.msra.mxu0 0
    %273 = vmatprep.subr.bf16.mxu0 0
    %274 = vmatpush1.bf16.msra.mxu0 0
    %275 = vmatprep.subr.bf16.mxu0 0
    %276 = vmatpush1.bf16.msra.mxu0 0
    %277 = vmatprep.subr.bf16.mxu0 0
    %278 = vmatpush1.bf16.msra.mxu0 0
    %279 = vmatprep.subr.bf16.mxu0 0
    %280 = vmatpush1.bf16.msra.mxu0 0
    %281 = vmatprep.subr.bf16.mxu0 0
    %282 = vmatpush1.bf16.msra.mxu0 0
    %283 = vmatprep.mubr.bf16.mxu0 0
    %284 = vmatmul.mubr.bf16.gmra.mrb[0].mxu0 %v167
    %v285 = vpop.f32.mrb[0].mxu0
    %v286 = vadd.f32 %v104, %v285
    %v287 = vpop.f32.mrb[0].mxu0
    %v288 = vadd.f32 %v108, %v287
    %v289 = vpop.f32.mrb[0].mxu0
    %v290 = vpop.f32.mrb[0].mxu0
    %291 = vdwg.mxu0
    %292 = vmatprep.subr.bf16.mxu0 %v156
    %293 = vmatpush1.bf16.msra.mxu0 %v155
    %294 = vmatprep.subr.bf16.mxu0 0
    %295 = vmatpush1.bf16.msra.mxu0 0
    %296 = vmatprep.subr.bf16.mxu0 0
    %297 = vmatpush1.bf16.msra.mxu0 0
    %298 = vmatprep.subr.bf16.mxu0 0
    %299 = vmatpush1.bf16.msra.mxu0 0
    %300 = vmatprep.subr.bf16.mxu0 0
    %301 = vmatpush1.bf16.msra.mxu0 0
    %302 = vmatprep.subr.bf16.mxu0 0
    %303 = vmatpush1.bf16.msra.mxu0 0
    %304 = vmatprep.subr.bf16.mxu0 0
    %305 = vmatpush1.bf16.msra.mxu0 0
    %306 = vmatprep.subr.bf16.mxu0 0
    %307 = vmatpush1.bf16.msra.mxu0 0
    %308 = vmatprep.subr.bf16.mxu0 0
    %309 = vmatpush1.bf16.msra.mxu0 0
    %310 = vmatprep.subr.bf16.mxu0 0
    %311 = vmatpush1.bf16.msra.mxu0 0
    %312 = vmatprep.subr.bf16.mxu0 0
    %313 = vmatpush1.bf16.msra.mxu0 0
    %314 = vmatprep.subr.bf16.mxu0 0
    %315 = vmatpush1.bf16.msra.mxu0 0
    %316 = vmatprep.subr.bf16.mxu0 0
    %317 = vmatpush1.bf16.msra.mxu0 0
    %318 = vmatprep.subr.bf16.mxu0 0
    %319 = vmatpush1.bf16.msra.mxu0 0
    %320 = vmatprep.subr.bf16.mxu0 0
    %321 = vmatpush1.bf16.msra.mxu0 0
    %322 = vmatprep.subr.bf16.mxu0 0
    %323 = vmatpush1.bf16.msra.mxu0 0
    %324 = vmatprep.mubr.bf16.mxu0 0
    %325 = vmatmul.mubr.bf16.gmra.mrb[0].mxu0 %v167
    %v326 = vpop.f32.mrb[0].mxu0
    %v327 = vadd.f32 %v112, %v326
    %v328 = vpop.f32.mrb[0].mxu0
    %v329 = vadd.f32 %v116, %v328
    %v330 = vpop.f32.mrb[0].mxu0
    %v331 = vpop.f32.mrb[0].mxu0
    %332 = vdwg.mxu0
    %v333 = vmax.f32 %v204, 0.0
    %v334 = vmax.f32 %v206, 0.0
    %v335 = vmax.f32 %v245, 0.0
    %v336 = vmax.f32 %v247, 0.0
    %v337 = vmax.f32 %v286, 0.0
    %v338 = vmax.f32 %v288, 0.0
    %v339 = vmax.f32 %v327, 0.0
    %v340 = vmax.f32 %v329, 0.0
    %v341 = vpack.c.bf16 %v333, %v333
    %v342 = vpack.c.bf16 %v334, %v334
    %v343 = vpack.c.bf16 %v335, %v335
    %v344 = vpack.c.bf16 %v336, %v336
    %v345 = vpack.c.bf16 %v337, %v337
    %v346 = vpack.c.bf16 %v338, %v338
    %v347 = vpack.c.bf16 %v339, %v339
    %v348 = vpack.c.bf16 %v340, %v340
    %v349 = vld [vmem:[#allocation2] sm:$0xff]
    %v350 = vld [vmem:[#allocation2 + $0x8] sm:$0xff]
    %v351 = vld [vmem:[#allocation2 + $0x10] sm:$0xff]
    %v352 = vld [vmem:[#allocation2 + $0x18] sm:$0xff]
    %v353 = vld [vmem:[#allocation2 + $0x20] sm:$0xff]
    %v354 = vld [vmem:[#allocation2 + $0x28] sm:$0xff]
    %v355 = vld [vmem:[#allocation2 + $0x30] sm:$0xff]
    %v356 = vld [vmem:[#allocation2 + $0x38] sm:$0xff]
    %v357 = vld [vmem:[#allocation2 + $0x40] sm:$0xff]
    %v358 = vld [vmem:[#allocation2 + $0x48] sm:$0xff]
    %v359 = vld [vmem:[#allocation2 + $0x50] sm:$0xff]
    %v360 = vld [vmem:[#allocation2 + $0x58] sm:$0xff]
    %v361 = vld [vmem:[#allocation2 + $0x60] sm:$0xff]
    %v362 = vld [vmem:[#allocation2 + $0x68] sm:$0xff]
    %v363 = vld [vmem:[#allocation2 + $0x70] sm:$0xff]
    %v364 = vld [vmem:[#allocation2 + $0x78] sm:$0xff]
    %v365 = vld [vmem:[#allocation2 + $0x80] sm:$0xff]
    %v366 = vld [vmem:[#allocation2 + $0x88] sm:$0xff]
    %v367 = vld [vmem:[#allocation2 + $0x90] sm:$0xff]
    %v368 = vld [vmem:[#allocation2 + $0x98] sm:$0xff]
    %v369 = vld [vmem:[#allocation2 + $0xa0] sm:$0xff]
    %v370 = vld [vmem:[#allocation2 + $0xa8] sm:$0xff]
    %v371 = vld [vmem:[#allocation2 + $0xb0] sm:$0xff]
    %v372 = vld [vmem:[#allocation2 + $0xb8] sm:$0xff]
    %v373 = vld [vmem:[#allocation2 + $0xc0] sm:$0xff]
    %v374 = vld [vmem:[#allocation2 + $0xc8] sm:$0xff]
    %v375 = vld [vmem:[#allocation2 + $0xd0] sm:$0xff]
    %v376 = vld [vmem:[#allocation2 + $0xd8] sm:$0xff]
    %v377 = vld [vmem:[#allocation2 + $0xe0] sm:$0xff]
    %v378 = vld [vmem:[#allocation2 + $0xe8] sm:$0xff]
    %v379 = vld [vmem:[#allocation2 + $0xf0] sm:$0xff]
    %v380 = vld [vmem:[#allocation2 + $0xf8] sm:$0xff]
    %v381 = vld [vmem:[#allocation2 + $0x100] sm:$0xff]
    %v382 = vld [vmem:[#allocation2 + $0x108] sm:$0xff]
    %v383 = vld [vmem:[#allocation2 + $0x110] sm:$0xff]
    %v384 = vld [vmem:[#allocation2 + $0x118] sm:$0xff]
    %v385 = vld [vmem:[#allocation2 + $0x120] sm:$0xff]
    %v386 = vld [vmem:[#allocation2 + $0x128] sm:$0xff]
    %v387 = vld [vmem:[#allocation2 + $0x130] sm:$0xff]
    %v388 = vld [vmem:[#allocation2 + $0x138] sm:$0xff]
    %v389 = vld [vmem:[#allocation2 + $0x140] sm:$0xff]
    %v390 = vld [vmem:[#allocation2 + $0x148] sm:$0xff]
    %v391 = vld [vmem:[#allocation2 + $0x150] sm:$0xff]
    %v392 = vld [vmem:[#allocation2 + $0x158] sm:$0xff]
    %v393 = vld [vmem:[#allocation2 + $0x160] sm:$0xff]
    %v394 = vld [vmem:[#allocation2 + $0x168] sm:$0xff]
    %v395 = vld [vmem:[#allocation2 + $0x170] sm:$0xff]
    %v396 = vld [vmem:[#allocation2 + $0x178] sm:$0xff]
    %v397 = vld [vmem:[#allocation2 + $0x180] sm:$0xff]
    %v398 = vld [vmem:[#allocation2 + $0x188] sm:$0xff]
    %v399 = vld [vmem:[#allocation2 + $0x190] sm:$0xff]
    %v400 = vld [vmem:[#allocation2 + $0x198] sm:$0xff]
    %v401 = vld [vmem:[#allocation2 + $0x1a0] sm:$0xff]
    %v402 = vld [vmem:[#allocation2 + $0x1a8] sm:$0xff]
    %v403 = vld [vmem:[#allocation2 + $0x1b0] sm:$0xff]
    %v404 = vld [vmem:[#allocation2 + $0x1b8] sm:$0xff]
    %v405 = vld [vmem:[#allocation2 + $0x1c0] sm:$0xff]
    %v406 = vld [vmem:[#allocation2 + $0x1c8] sm:$0xff]
    %v407 = vld [vmem:[#allocation2 + $0x1d0] sm:$0xff]
    %v408 = vld [vmem:[#allocation2 + $0x1d8] sm:$0xff]
    %v409 = vld [vmem:[#allocation2 + $0x1e0] sm:$0xff]
    %v410 = vld [vmem:[#allocation2 + $0x1e8] sm:$0xff]
    %v411 = vld [vmem:[#allocation2 + $0x1f0] sm:$0xff]
    %v412 = vld [vmem:[#allocation2 + $0x1f8] sm:$0xff]
    %v413 = vld [vmem:[#allocation2 + $0x200] sm:$0xff]
    %v414 = vld [vmem:[#allocation2 + $0x208] sm:$0xff]
    %v415 = vld [vmem:[#allocation2 + $0x210] sm:$0xff]
    %v416 = vld [vmem:[#allocation2 + $0x218] sm:$0xff]
    %v417 = vld [vmem:[#allocation2 + $0x220] sm:$0xff]
    %v418 = vld [vmem:[#allocation2 + $0x228] sm:$0xff]
    %v419 = vld [vmem:[#allocation2 + $0x230] sm:$0xff]
    %v420 = vld [vmem:[#allocation2 + $0x238] sm:$0xff]
    %v421 = vld [vmem:[#allocation2 + $0x240] sm:$0xff]
    %v422 = vld [vmem:[#allocation2 + $0x248] sm:$0xff]
    %v423 = vld [vmem:[#allocation2 + $0x250] sm:$0xff]
    %v424 = vld [vmem:[#allocation2 + $0x258] sm:$0xff]
    %v425 = vld [vmem:[#allocation2 + $0x260] sm:$0xff]
    %v426 = vld [vmem:[#allocation2 + $0x268] sm:$0xff]
    %v427 = vld [vmem:[#allocation2 + $0x270] sm:$0xff]
    %v428 = vld [vmem:[#allocation2 + $0x278] sm:$0xff]
    %v429 = vld [vmem:[#allocation2 + $0x280] sm:$0xff]
    %v430 = vld [vmem:[#allocation2 + $0x288] sm:$0xff]
    %v431 = vld [vmem:[#allocation2 + $0x290] sm:$0xff]
    %v432 = vld [vmem:[#allocation2 + $0x298] sm:$0xff]
    %v433 = vld [vmem:[#allocation2 + $0x2a0] sm:$0xff]
    %v434 = vld [vmem:[#allocation2 + $0x2a8] sm:$0xff]
    %v435 = vld [vmem:[#allocation2 + $0x2b0] sm:$0xff]
    %v436 = vld [vmem:[#allocation2 + $0x2b8] sm:$0xff]
    %v437 = vld [vmem:[#allocation2 + $0x2c0] sm:$0xff]
    %v438 = vld [vmem:[#allocation2 + $0x2c8] sm:$0xff]
    %v439 = vld [vmem:[#allocation2 + $0x2d0] sm:$0xff]
    %v440 = vld [vmem:[#allocation2 + $0x2d8] sm:$0xff]
    %v441 = vld [vmem:[#allocation2 + $0x2e0] sm:$0xff]
    %v442 = vld [vmem:[#allocation2 + $0x2e8] sm:$0xff]
    %v443 = vld [vmem:[#allocation2 + $0x2f0] sm:$0xff]
    %v444 = vld [vmem:[#allocation2 + $0x2f8] sm:$0xff]
    %v445 = vld [vmem:[#allocation2 + $0x300] sm:$0xff]
    %v446 = vld [vmem:[#allocation2 + $0x308] sm:$0xff]
    %v447 = vld [vmem:[#allocation2 + $0x310] sm:$0xff]
    %v448 = vld [vmem:[#allocation2 + $0x318] sm:$0xff]
    %v449 = vld [vmem:[#allocation2 + $0x320] sm:$0xff]
    %v450 = vld [vmem:[#allocation2 + $0x328] sm:$0xff]
    %v451 = vld [vmem:[#allocation2 + $0x330] sm:$0xff]
    %v452 = vld [vmem:[#allocation2 + $0x338] sm:$0xff]
    %v453 = vld [vmem:[#allocation2 + $0x340] sm:$0xff]
    %v454 = vld [vmem:[#allocation2 + $0x348] sm:$0xff]
    %v455 = vld [vmem:[#allocation2 + $0x350] sm:$0xff]
    %v456 = vld [vmem:[#allocation2 + $0x358] sm:$0xff]
    %v457 = vld [vmem:[#allocation2 + $0x360] sm:$0xff]
    %v458 = vld [vmem:[#allocation2 + $0x368] sm:$0xff]
    %v459 = vld [vmem:[#allocation2 + $0x370] sm:$0xff]
    %v460 = vld [vmem:[#allocation2 + $0x378] sm:$0xff]
    %v461 = vld [vmem:[#allocation2 + $0x380] sm:$0xff]
    %v462 = vld [vmem:[#allocation2 + $0x388] sm:$0xff]
    %v463 = vld [vmem:[#allocation2 + $0x390] sm:$0xff]
    %v464 = vld [vmem:[#allocation2 + $0x398] sm:$0xff]
    %v465 = vld [vmem:[#allocation2 + $0x3a0] sm:$0xff]
    %v466 = vld [vmem:[#allocation2 + $0x3a8] sm:$0xff]
    %v467 = vld [vmem:[#allocation2 + $0x3b0] sm:$0xff]
    %v468 = vld [vmem:[#allocation2 + $0x3b8] sm:$0xff]
    %v469 = vld [vmem:[#allocation2 + $0x3c0] sm:$0xff]
    %v470 = vld [vmem:[#allocation2 + $0x3c8] sm:$0xff]
    %v471 = vld [vmem:[#allocation2 + $0x3d0] sm:$0xff]
    %v472 = vld [vmem:[#allocation2 + $0x3d8] sm:$0xff]
    %v473 = vld [vmem:[#allocation2 + $0x3e0] sm:$0xff]
    %v474 = vld [vmem:[#allocation2 + $0x3e8] sm:$0xff]
    %v475 = vld [vmem:[#allocation2 + $0x3f0] sm:$0xff]
    %v476 = vld [vmem:[#allocation2 + $0x3f8] sm:$0xff]
    %v477 = vld [vmem:[%s4] sm:$0x3]
    %v479 = vlaneseq
    %v480 = vshrl.u32 %v479, 7
    %v481 = vsub.s32 0, %v480
    %v482 = vrot.slane %v477, %v481
    %v483 = vlaneseq
    %v484 = vshrl.u32 %v483, 7
    %v485 = vsub.s32 1, %v484
    %v486 = vrot.slane %v477, %v485
    %v617 = vunpack.c.l.b16 %v349
    %v618 = vunpack.c.h.b16 %v349
    %v619 = vunpack.c.l.b16 %v350
    %v620 = vunpack.c.h.b16 %v350
    %v621 = vunpack.c.l.b16 %v351
    %v622 = vunpack.c.h.b16 %v351
    %v623 = vunpack.c.l.b16 %v352
    %v624 = vunpack.c.h.b16 %v352
    %v625 = vunpack.c.l.b16 %v353
    %v626 = vunpack.c.h.b16 %v353
    %v627 = vunpack.c.l.b16 %v354
    %v628 = vunpack.c.h.b16 %v354
    %v629 = vunpack.c.l.b16 %v355
    %v630 = vunpack.c.h.b16 %v355
    %v631 = vunpack.c.l.b16 %v356
    %v632 = vunpack.c.h.b16 %v356
    %v633 = vunpack.c.l.b16 %v357
    %v634 = vunpack.c.h.b16 %v357
    %v635 = vunpack.c.l.b16 %v358
    %v636 = vunpack.c.h.b16 %v358
    %v637 = vunpack.c.l.b16 %v359
    %v638 = vunpack.c.h.b16 %v359
    %v639 = vunpack.c.l.b16 %v360
    %v640 = vunpack.c.h.b16 %v360
    %v641 = vunpack.c.l.b16 %v361
    %v642 = vunpack.c.h.b16 %v361
    %v643 = vunpack.c.l.b16 %v362
    %v644 = vunpack.c.h.b16 %v362
    %v645 = vunpack.c.l.b16 %v363
    %v646 = vunpack.c.h.b16 %v363
    %v647 = vunpack.c.l.b16 %v364
    %v648 = vunpack.c.h.b16 %v364
    %v649 = vunpack.c.l.b16 %v365
    %v650 = vunpack.c.h.b16 %v365
    %v651 = vunpack.c.l.b16 %v366
    %v652 = vunpack.c.h.b16 %v366
    %v653 = vunpack.c.l.b16 %v367
    %v654 = vunpack.c.h.b16 %v367
    %v655 = vunpack.c.l.b16 %v368
    %v656 = vunpack.c.h.b16 %v368
    %v657 = vunpack.c.l.b16 %v369
    %v658 = vunpack.c.h.b16 %v369
    %v659 = vunpack.c.l.b16 %v370
    %v660 = vunpack.c.h.b16 %v370
    %v661 = vunpack.c.l.b16 %v371
    %v662 = vunpack.c.h.b16 %v371
    %v663 = vunpack.c.l.b16 %v372
    %v664 = vunpack.c.h.b16 %v372
    %v665 = vunpack.c.l.b16 %v373
    %v666 = vunpack.c.h.b16 %v373
    %v667 = vunpack.c.l.b16 %v374
    %v668 = vunpack.c.h.b16 %v374
    %v669 = vunpack.c.l.b16 %v375
    %v670 = vunpack.c.h.b16 %v375
    %v671 = vunpack.c.l.b16 %v376
    %v672 = vunpack.c.h.b16 %v376
    %v673 = vunpack.c.l.b16 %v377
    %v674 = vunpack.c.h.b16 %v377
    %v675 = vunpack.c.l.b16 %v378
    %v676 = vunpack.c.h.b16 %v378
    %v677 = vunpack.c.l.b16 %v379
    %v678 = vunpack.c.h.b16 %v379
    %v679 = vunpack.c.l.b16 %v380
    %v680 = vunpack.c.h.b16 %v380
    %v681 = vunpack.c.l.b16 %v381
    %v682 = vunpack.c.h.b16 %v381
    %v683 = vunpack.c.l.b16 %v382
    %v684 = vunpack.c.h.b16 %v382
    %v685 = vunpack.c.l.b16 %v383
    %v686 = vunpack.c.h.b16 %v383
    %v687 = vunpack.c.l.b16 %v384
    %v688 = vunpack.c.h.b16 %v384
    %v689 = vunpack.c.l.b16 %v385
    %v690 = vunpack.c.h.b16 %v385
    %v691 = vunpack.c.l.b16 %v386
    %v692 = vunpack.c.h.b16 %v386
    %v693 = vunpack.c.l.b16 %v387
    %v694 = vunpack.c.h.b16 %v387
    %v695 = vunpack.c.l.b16 %v388
    %v696 = vunpack.c.h.b16 %v388
    %v697 = vunpack.c.l.b16 %v389
    %v698 = vunpack.c.h.b16 %v389
    %v699 = vunpack.c.l.b16 %v390
    %v700 = vunpack.c.h.b16 %v390
    %v701 = vunpack.c.l.b16 %v391
    %v702 = vunpack.c.h.b16 %v391
    %v703 = vunpack.c.l.b16 %v392
    %v704 = vunpack.c.h.b16 %v392
    %v705 = vunpack.c.l.b16 %v393
    %v706 = vunpack.c.h.b16 %v393
    %v707 = vunpack.c.l.b16 %v394
    %v708 = vunpack.c.h.b16 %v394
    %v709 = vunpack.c.l.b16 %v395
    %v710 = vunpack.c.h.b16 %v395
    %v711 = vunpack.c.l.b16 %v396
    %v712 = vunpack.c.h.b16 %v396
    %v713 = vunpack.c.l.b16 %v397
    %v714 = vunpack.c.h.b16 %v397
    %v715 = vunpack.c.l.b16 %v398
    %v716 = vunpack.c.h.b16 %v398
    %v717 = vunpack.c.l.b16 %v399
    %v718 = vunpack.c.h.b16 %v399
    %v719 = vunpack.c.l.b16 %v400
    %v720 = vunpack.c.h.b16 %v400
    %v721 = vunpack.c.l.b16 %v401
    %v722 = vunpack.c.h.b16 %v401
    %v723 = vunpack.c.l.b16 %v402
    %v724 = vunpack.c.h.b16 %v402
    %v725 = vunpack.c.l.b16 %v403
    %v726 = vunpack.c.h.b16 %v403
    %v727 = vunpack.c.l.b16 %v404
    %v728 = vunpack.c.h.b16 %v404
    %v729 = vunpack.c.l.b16 %v405
    %v730 = vunpack.c.h.b16 %v405
    %v731 = vunpack.c.l.b16 %v406
    %v732 = vunpack.c.h.b16 %v406
    %v733 = vunpack.c.l.b16 %v407
    %v734 = vunpack.c.h.b16 %v407
    %v735 = vunpack.c.l.b16 %v408
    %v736 = vunpack.c.h.b16 %v408
    %v737 = vunpack.c.l.b16 %v409
    %v738 = vunpack.c.h.b16 %v409
    %v739 = vunpack.c.l.b16 %v410
    %v740 = vunpack.c.h.b16 %v410
    %v741 = vunpack.c.l.b16 %v411
    %v742 = vunpack.c.h.b16 %v411
    %v743 = vunpack.c.l.b16 %v412
    %v744 = vunpack.c.h.b16 %v412
    %v745 = vunpack.c.l.b16 %v413
    %v746 = vunpack.c.h.b16 %v413
    %v747 = vunpack.c.l.b16 %v414
    %v748 = vunpack.c.h.b16 %v414
    %v749 = vunpack.c.l.b16 %v415
    %v750 = vunpack.c.h.b16 %v415
    %v751 = vunpack.c.l.b16 %v416
    %v752 = vunpack.c.h.b16 %v416
    %v753 = vunpack.c.l.b16 %v417
    %v754 = vunpack.c.h.b16 %v417
    %v755 = vunpack.c.l.b16 %v418
    %v756 = vunpack.c.h.b16 %v418
    %v757 = vunpack.c.l.b16 %v419
    %v758 = vunpack.c.h.b16 %v419
    %v759 = vunpack.c.l.b16 %v420
    %v760 = vunpack.c.h.b16 %v420
    %v761 = vunpack.c.l.b16 %v421
    %v762 = vunpack.c.h.b16 %v421
    %v763 = vunpack.c.l.b16 %v422
    %v764 = vunpack.c.h.b16 %v422
    %v765 = vunpack.c.l.b16 %v423
    %v766 = vunpack.c.h.b16 %v423
    %v767 = vunpack.c.l.b16 %v424
    %v768 = vunpack.c.h.b16 %v424
    %v769 = vunpack.c.l.b16 %v425
    %v770 = vunpack.c.h.b16 %v425
    %v771 = vunpack.c.l.b16 %v426
    %v772 = vunpack.c.h.b16 %v426
    %v773 = vunpack.c.l.b16 %v427
    %v774 = vunpack.c.h.b16 %v427
    %v775 = vunpack.c.l.b16 %v428
    %v776 = vunpack.c.h.b16 %v428
    %v777 = vunpack.c.l.b16 %v429
    %v778 = vunpack.c.h.b16 %v429
    %v779 = vunpack.c.l.b16 %v430
    %v780 = vunpack.c.h.b16 %v430
    %v781 = vunpack.c.l.b16 %v431
    %v782 = vunpack.c.h.b16 %v431
    %v783 = vunpack.c.l.b16 %v432
    %v784 = vunpack.c.h.b16 %v432
    %v785 = vunpack.c.l.b16 %v433
    %v786 = vunpack.c.h.b16 %v433
    %v787 = vunpack.c.l.b16 %v434
    %v788 = vunpack.c.h.b16 %v434
    %v789 = vunpack.c.l.b16 %v435
    %v790 = vunpack.c.h.b16 %v435
    %v791 = vunpack.c.l.b16 %v436
    %v792 = vunpack.c.h.b16 %v436
    %v793 = vunpack.c.l.b16 %v437
    %v794 = vunpack.c.h.b16 %v437
    %v795 = vunpack.c.l.b16 %v438
    %v796 = vunpack.c.h.b16 %v438
    %v797 = vunpack.c.l.b16 %v439
    %v798 = vunpack.c.h.b16 %v439
    %v799 = vunpack.c.l.b16 %v440
    %v800 = vunpack.c.h.b16 %v440
    %v801 = vunpack.c.l.b16 %v441
    %v802 = vunpack.c.h.b16 %v441
    %v803 = vunpack.c.l.b16 %v442
    %v804 = vunpack.c.h.b16 %v442
    %v805 = vunpack.c.l.b16 %v443
    %v806 = vunpack.c.h.b16 %v443
    %v807 = vunpack.c.l.b16 %v444
    %v808 = vunpack.c.h.b16 %v444
    %v809 = vunpack.c.l.b16 %v445
    %v810 = vunpack.c.h.b16 %v445
    %v811 = vunpack.c.l.b16 %v446
    %v812 = vunpack.c.h.b16 %v446
    %v813 = vunpack.c.l.b16 %v447
    %v814 = vunpack.c.h.b16 %v447
    %v815 = vunpack.c.l.b16 %v448
    %v816 = vunpack.c.h.b16 %v448
    %v817 = vunpack.c.l.b16 %v449
    %v818 = vunpack.c.h.b16 %v449
    %v819 = vunpack.c.l.b16 %v450
    %v820 = vunpack.c.h.b16 %v450
    %v821 = vunpack.c.l.b16 %v451
    %v822 = vunpack.c.h.b16 %v451
    %v823 = vunpack.c.l.b16 %v452
    %v824 = vunpack.c.h.b16 %v452
    %v825 = vunpack.c.l.b16 %v453
    %v826 = vunpack.c.h.b16 %v453
    %v827 = vunpack.c.l.b16 %v454
    %v828 = vunpack.c.h.b16 %v454
    %v829 = vunpack.c.l.b16 %v455
    %v830 = vunpack.c.h.b16 %v455
    %v831 = vunpack.c.l.b16 %v456
    %v832 = vunpack.c.h.b16 %v456
    %v833 = vunpack.c.l.b16 %v457
    %v834 = vunpack.c.h.b16 %v457
    %v835 = vunpack.c.l.b16 %v458
    %v836 = vunpack.c.h.b16 %v458
    %v837 = vunpack.c.l.b16 %v459
    %v838 = vunpack.c.h.b16 %v459
    %v839 = vunpack.c.l.b16 %v460
    %v840 = vunpack.c.h.b16 %v460
    %v841 = vunpack.c.l.b16 %v461
    %v842 = vunpack.c.h.b16 %v461
    %v843 = vunpack.c.l.b16 %v462
    %v844 = vunpack.c.h.b16 %v462
    %v845 = vunpack.c.l.b16 %v463
    %v846 = vunpack.c.h.b16 %v463
    %v847 = vunpack.c.l.b16 %v464
    %v848 = vunpack.c.h.b16 %v464
    %v849 = vunpack.c.l.b16 %v465
    %v850 = vunpack.c.h.b16 %v465
    %v851 = vunpack.c.l.b16 %v466
    %v852 = vunpack.c.h.b16 %v466
    %v853 = vunpack.c.l.b16 %v467
    %v854 = vunpack.c.h.b16 %v467
    %v855 = vunpack.c.l.b16 %v468
    %v856 = vunpack.c.h.b16 %v468
    %v857 = vunpack.c.l.b16 %v469
    %v858 = vunpack.c.h.b16 %v469
    %v859 = vunpack.c.l.b16 %v470
    %v860 = vunpack.c.h.b16 %v470
    %v861 = vunpack.c.l.b16 %v471
    %v862 = vunpack.c.h.b16 %v471
    %v863 = vunpack.c.l.b16 %v472
    %v864 = vunpack.c.h.b16 %v472
    %v865 = vunpack.c.l.b16 %v473
    %v866 = vunpack.c.h.b16 %v473
    %v867 = vunpack.c.l.b16 %v474
    %v868 = vunpack.c.h.b16 %v474
    %v869 = vunpack.c.l.b16 %v475
    %v870 = vunpack.c.h.b16 %v475
    %v871 = vunpack.c.l.b16 %v476
    %v872 = vunpack.c.h.b16 %v476
    %v873 = vpack.c.b16 %v619, %v617
    %v874 = vpack.c.b16 %v620, %v618
    %v875 = vpack.c.b16 %v623, %v621
    %v876 = vpack.c.b16 %v624, %v622
    %v877 = vpack.c.b16 %v627, %v625
    %v878 = vpack.c.b16 %v628, %v626
    %v879 = vpack.c.b16 %v631, %v629
    %v880 = vpack.c.b16 %v632, %v630
    %v881 = vpack.c.b16 %v635, %v633
    %v882 = vpack.c.b16 %v636, %v634
    %v883 = vpack.c.b16 %v639, %v637
    %v884 = vpack.c.b16 %v640, %v638
    %v885 = vpack.c.b16 %v643, %v641
    %v886 = vpack.c.b16 %v644, %v642
    %v887 = vpack.c.b16 %v647, %v645
    %v888 = vpack.c.b16 %v648, %v646
    %v889 = vpack.c.b16 %v651, %v649
    %v890 = vpack.c.b16 %v652, %v650
    %v891 = vpack.c.b16 %v655, %v653
    %v892 = vpack.c.b16 %v656, %v654
    %v893 = vpack.c.b16 %v659, %v657
    %v894 = vpack.c.b16 %v660, %v658
    %v895 = vpack.c.b16 %v663, %v661
    %v896 = vpack.c.b16 %v664, %v662
    %v897 = vpack.c.b16 %v667, %v665
    %v898 = vpack.c.b16 %v668, %v666
    %v899 = vpack.c.b16 %v671, %v669
    %v900 = vpack.c.b16 %v672, %v670
    %v901 = vpack.c.b16 %v675, %v673
    %v902 = vpack.c.b16 %v676, %v674
    %v903 = vpack.c.b16 %v679, %v677
    %v904 = vpack.c.b16 %v680, %v678
    %v905 = vpack.c.b16 %v683, %v681
    %v906 = vpack.c.b16 %v684, %v682
    %v907 = vpack.c.b16 %v687, %v685
    %v908 = vpack.c.b16 %v688, %v686
    %v909 = vpack.c.b16 %v691, %v689
    %v910 = vpack.c.b16 %v692, %v690
    %v911 = vpack.c.b16 %v695, %v693
    %v912 = vpack.c.b16 %v696, %v694
    %v913 = vpack.c.b16 %v699, %v697
    %v914 = vpack.c.b16 %v700, %v698
    %v915 = vpack.c.b16 %v703, %v701
    %v916 = vpack.c.b16 %v704, %v702
    %v917 = vpack.c.b16 %v707, %v705
    %v918 = vpack.c.b16 %v708, %v706
    %v919 = vpack.c.b16 %v711, %v709
    %v920 = vpack.c.b16 %v712, %v710
    %v921 = vpack.c.b16 %v715, %v713
    %v922 = vpack.c.b16 %v716, %v714
    %v923 = vpack.c.b16 %v719, %v717
    %v924 = vpack.c.b16 %v720, %v718
    %v925 = vpack.c.b16 %v723, %v721
    %v926 = vpack.c.b16 %v724, %v722
    %v927 = vpack.c.b16 %v727, %v725
    %v928 = vpack.c.b16 %v728, %v726
    %v929 = vpack.c.b16 %v731, %v729
    %v930 = vpack.c.b16 %v732, %v730
    %v931 = vpack.c.b16 %v735, %v733
    %v932 = vpack.c.b16 %v736, %v734
    %v933 = vpack.c.b16 %v739, %v737
    %v934 = vpack.c.b16 %v740, %v738
    %v935 = vpack.c.b16 %v743, %v741
    %v936 = vpack.c.b16 %v744, %v742
    %v937 = vpack.c.b16 %v747, %v745
    %v938 = vpack.c.b16 %v748, %v746
    %v939 = vpack.c.b16 %v751, %v749
    %v940 = vpack.c.b16 %v752, %v750
    %v941 = vpack.c.b16 %v755, %v753
    %v942 = vpack.c.b16 %v756, %v754
    %v943 = vpack.c.b16 %v759, %v757
    %v944 = vpack.c.b16 %v760, %v758
    %v945 = vpack.c.b16 %v763, %v761
    %v946 = vpack.c.b16 %v764, %v762
    %v947 = vpack.c.b16 %v767, %v765
    %v948 = vpack.c.b16 %v768, %v766
    %v949 = vpack.c.b16 %v771, %v769
    %v950 = vpack.c.b16 %v772, %v770
    %v951 = vpack.c.b16 %v775, %v773
    %v952 = vpack.c.b16 %v776, %v774
    %v953 = vpack.c.b16 %v779, %v777
    %v954 = vpack.c.b16 %v780, %v778
    %v955 = vpack.c.b16 %v783, %v781
    %v956 = vpack.c.b16 %v784, %v782
    %v957 = vpack.c.b16 %v787, %v785
    %v958 = vpack.c.b16 %v788, %v786
    %v959 = vpack.c.b16 %v791, %v789
    %v960 = vpack.c.b16 %v792, %v790
    %v961 = vpack.c.b16 %v795, %v793
    %v962 = vpack.c.b16 %v796, %v794
    %v963 = vpack.c.b16 %v799, %v797
    %v964 = vpack.c.b16 %v800, %v798
    %v965 = vpack.c.b16 %v803, %v801
    %v966 = vpack.c.b16 %v804, %v802
    %v967 = vpack.c.b16 %v807, %v805
    %v968 = vpack.c.b16 %v808, %v806
    %v969 = vpack.c.b16 %v811, %v809
    %v970 = vpack.c.b16 %v812, %v810
    %v971 = vpack.c.b16 %v815, %v813
    %v972 = vpack.c.b16 %v816, %v814
    %v973 = vpack.c.b16 %v819, %v817
    %v974 = vpack.c.b16 %v820, %v818
    %v975 = vpack.c.b16 %v823, %v821
    %v976 = vpack.c.b16 %v824, %v822
    %v977 = vpack.c.b16 %v827, %v825
    %v978 = vpack.c.b16 %v828, %v826
    %v979 = vpack.c.b16 %v831, %v829
    %v980 = vpack.c.b16 %v832, %v830
    %v981 = vpack.c.b16 %v835, %v833
    %v982 = vpack.c.b16 %v836, %v834
    %v983 = vpack.c.b16 %v839, %v837
    %v984 = vpack.c.b16 %v840, %v838
    %v985 = vpack.c.b16 %v843, %v841
    %v986 = vpack.c.b16 %v844, %v842
    %v987 = vpack.c.b16 %v847, %v845
    %v988 = vpack.c.b16 %v848, %v846
    %v989 = vpack.c.b16 %v851, %v849
    %v990 = vpack.c.b16 %v852, %v850
    %v991 = vpack.c.b16 %v855, %v853
    %v992 = vpack.c.b16 %v856, %v854
    %v993 = vpack.c.b16 %v859, %v857
    %v994 = vpack.c.b16 %v860, %v858
    %v995 = vpack.c.b16 %v863, %v861
    %v996 = vpack.c.b16 %v864, %v862
    %v997 = vpack.c.b16 %v867, %v865
    %v998 = vpack.c.b16 %v868, %v866
    %v999 = vpack.c.b16 %v871, %v869
    %v1000 = vpack.c.b16 %v872, %v870
    %1129 = vmatprep.subr.bf16.mxu0 %v874
    %1130 = vmatpush1.bf16.msra.mxu0 %v873
    %1131 = vmatprep.subr.bf16.mxu0 %v876
    %1132 = vmatpush1.bf16.msra.mxu0 %v875
    %1133 = vmatprep.subr.bf16.mxu0 %v878
    %1134 = vmatpush1.bf16.msra.mxu0 %v877
    %1135 = vmatprep.subr.bf16.mxu0 %v880
    %1136 = vmatpush1.bf16.msra.mxu0 %v879
    %1137 = vmatprep.subr.bf16.mxu0 %v882
    %1138 = vmatpush1.bf16.msra.mxu0 %v881
    %1139 = vmatprep.subr.bf16.mxu0 %v884
    %1140 = vmatpush1.bf16.msra.mxu0 %v883
    %1141 = vmatprep.subr.bf16.mxu0 %v886
    %1142 = vmatpush1.bf16.msra.mxu0 %v885
    %1143 = vmatprep.subr.bf16.mxu0 %v888
    %1144 = vmatpush1.bf16.msra.mxu0 %v887
    %1145 = vmatprep.subr.bf16.mxu0 %v890
    %1146 = vmatpush1.bf16.msra.mxu0 %v889
    %1147 = vmatprep.subr.bf16.mxu0 %v892
    %1148 = vmatpush1.bf16.msra.mxu0 %v891
    %1149 = vmatprep.subr.bf16.mxu0 %v894
    %1150 = vmatpush1.bf16.msra.mxu0 %v893
    %1151 = vmatprep.subr.bf16.mxu0 %v896
    %1152 = vmatpush1.bf16.msra.mxu0 %v895
    %1153 = vmatprep.subr.bf16.mxu0 %v898
    %1154 = vmatpush1.bf16.msra.mxu0 %v897
    %1155 = vmatprep.subr.bf16.mxu0 %v900
    %1156 = vmatpush1.bf16.msra.mxu0 %v899
    %1157 = vmatprep.subr.bf16.mxu0 %v902
    %1158 = vmatpush1.bf16.msra.mxu0 %v901
    %1159 = vmatprep.subr.bf16.mxu0 %v904
    %1160 = vmatpush1.bf16.msra.mxu0 %v903
    %1161 = vmatprep.mubr.bf16.mxu0 %v342
    %1162 = vmatmul.mubr.bf16.gmra.mrb[0].mxu0 %v341
    %v1163 = vpop.f32.mrb[0].mxu0
    %v1164 = vadd.f32 %v482, %v1163
    %v1165 = vpop.f32.mrb[0].mxu0
    %v1166 = vadd.f32 %v486, %v1165
    %v1167 = vpop.f32.mrb[0].mxu0
    %v1168 = vpop.f32.mrb[0].mxu0
    %1169 = vdwg.mxu0
    %1170 = vmatprep.subr.bf16.mxu0 %v906
    %1171 = vmatpush1.bf16.msra.mxu0 %v905
    %1172 = vmatprep.subr.bf16.mxu0 %v908
    %1173 = vmatpush1.bf16.msra.mxu0 %v907
    %1174 = vmatprep.subr.bf16.mxu0 %v910
    %1175 = vmatpush1.bf16.msra.mxu0 %v909
    %1176 = vmatprep.subr.bf16.mxu0 %v912
    %1177 = vmatpush1.bf16.msra.mxu0 %v911
    %1178 = vmatprep.subr.bf16.mxu0 %v914
    %1179 = vmatpush1.bf16.msra.mxu0 %v913
    %1180 = vmatprep.subr.bf16.mxu0 %v916
    %1181 = vmatpush1.bf16.msra.mxu0 %v915
    %1182 = vmatprep.subr.bf16.mxu0 %v918
    %1183 = vmatpush1.bf16.msra.mxu0 %v917
    %1184 = vmatprep.subr.bf16.mxu0 %v920
    %1185 = vmatpush1.bf16.msra.mxu0 %v919
    %1186 = vmatprep.subr.bf16.mxu0 %v922
    %1187 = vmatpush1.bf16.msra.mxu0 %v921
    %1188 = vmatprep.subr.bf16.mxu0 %v924
    %1189 = vmatpush1.bf16.msra.mxu0 %v923
    %1190 = vmatprep.subr.bf16.mxu0 %v926
    %1191 = vmatpush1.bf16.msra.mxu0 %v925
    %1192 = vmatprep.subr.bf16.mxu0 %v928
    %1193 = vmatpush1.bf16.msra.mxu0 %v927
    %1194 = vmatprep.subr.bf16.mxu0 %v930
    %1195 = vmatpush1.bf16.msra.mxu0 %v929
    %1196 = vmatprep.subr.bf16.mxu0 %v932
    %1197 = vmatpush1.bf16.msra.mxu0 %v931
    %1198 = vmatprep.subr.bf16.mxu0 %v934
    %1199 = vmatpush1.bf16.msra.mxu0 %v933
    %1200 = vmatprep.subr.bf16.mxu0 %v936
    %1201 = vmatpush1.bf16.msra.mxu0 %v935
    %1202 = vmatprep.mubr.bf16.mxu0 %v344
    %1203 = vmatmul.mubr.bf16.gmra.mrb[0].mxu0 %v343
    %v1204 = vpop.f32.mrb[0].mxu0
    %v1205 = vadd.f32 %v1164, %v1204
    %v1206 = vpop.f32.mrb[0].mxu0
    %v1207 = vadd.f32 %v1166, %v1206
    %v1208 = vpop.f32.mrb[0].mxu0
    %v1209 = vpop.f32.mrb[0].mxu0
    %1210 = vdwg.mxu0
    %1211 = vmatprep.subr.bf16.mxu0 %v938
    %1212 = vmatpush1.bf16.msra.mxu0 %v937
    %1213 = vmatprep.subr.bf16.mxu0 %v940
    %1214 = vmatpush1.bf16.msra.mxu0 %v939
    %1215 = vmatprep.subr.bf16.mxu0 %v942
    %1216 = vmatpush1.bf16.msra.mxu0 %v941
    %1217 = vmatprep.subr.bf16.mxu0 %v944
    %1218 = vmatpush1.bf16.msra.mxu0 %v943
    %1219 = vmatprep.subr.bf16.mxu0 %v946
    %1220 = vmatpush1.bf16.msra.mxu0 %v945
    %1221 = vmatprep.subr.bf16.mxu0 %v948
    %1222 = vmatpush1.bf16.msra.mxu0 %v947
    %1223 = vmatprep.subr.bf16.mxu0 %v950
    %1224 = vmatpush1.bf16.msra.mxu0 %v949
    %1225 = vmatprep.subr.bf16.mxu0 %v952
    %1226 = vmatpush1.bf16.msra.mxu0 %v951
    %1227 = vmatprep.subr.bf16.mxu0 %v954
    %1228 = vmatpush1.bf16.msra.mxu0 %v953
    %1229 = vmatprep.subr.bf16.mxu0 %v956
    %1230 = vmatpush1.bf16.msra.mxu0 %v955
    %1231 = vmatprep.subr.bf16.mxu0 %v958
    %1232 = vmatpush1.bf16.msra.mxu0 %v957
    %1233 = vmatprep.subr.bf16.mxu0 %v960
    %1234 = vmatpush1.bf16.msra.mxu0 %v959
    %1235 = vmatprep.subr.bf16.mxu0 %v962
    %1236 = vmatpush1.bf16.msra.mxu0 %v961
    %1237 = vmatprep.subr.bf16.mxu0 %v964
    %1238 = vmatpush1.bf16.msra.mxu0 %v963
    %1239 = vmatprep.subr.bf16.mxu0 %v966
    %1240 = vmatpush1.bf16.msra.mxu0 %v965
    %1241 = vmatprep.subr.bf16.mxu0 %v968
    %1242 = vmatpush1.bf16.msra.mxu0 %v967
    %1243 = vmatprep.mubr.bf16.mxu0 %v346
    %1244 = vmatmul.mubr.bf16.gmra.mrb[0].mxu0 %v345
    %v1245 = vpop.f32.mrb[0].mxu0
    %v1246 = vadd.f32 %v1205, %v1245
    %v1247 = vpop.f32.mrb[0].mxu0
    %v1248 = vadd.f32 %v1207, %v1247
    %v1249 = vpop.f32.mrb[0].mxu0
    %v1250 = vpop.f32.mrb[0].mxu0
    %1251 = vdwg.mxu0
    %1252 = vmatprep.subr.bf16.mxu0 %v970
    %1253 = vmatpush1.bf16.msra.mxu0 %v969
    %1254 = vmatprep.subr.bf16.mxu0 %v972
    %1255 = vmatpush1.bf16.msra.mxu0 %v971
    %1256 = vmatprep.subr.bf16.mxu0 %v974
    %1257 = vmatpush1.bf16.msra.mxu0 %v973
    %1258 = vmatprep.subr.bf16.mxu0 %v976
    %1259 = vmatpush1.bf16.msra.mxu0 %v975
    %1260 = vmatprep.subr.bf16.mxu0 %v978
    %1261 = vmatpush1.bf16.msra.mxu0 %v977
    %1262 = vmatprep.subr.bf16.mxu0 %v980
    %1263 = vmatpush1.bf16.msra.mxu0 %v979
    %1264 = vmatprep.subr.bf16.mxu0 %v982
    %1265 = vmatpush1.bf16.msra.mxu0 %v981
    %1266 = vmatprep.subr.bf16.mxu0 %v984
    %1267 = vmatpush1.bf16.msra.mxu0 %v983
    %1268 = vmatprep.subr.bf16.mxu0 %v986
    %1269 = vmatpush1.bf16.msra.mxu0 %v985
    %1270 = vmatprep.subr.bf16.mxu0 %v988
    %1271 = vmatpush1.bf16.msra.mxu0 %v987
    %1272 = vmatprep.subr.bf16.mxu0 %v990
    %1273 = vmatpush1.bf16.msra.mxu0 %v989
    %1274 = vmatprep.subr.bf16.mxu0 %v992
    %1275 = vmatpush1.bf16.msra.mxu0 %v991
    %1276 = vmatprep.subr.bf16.mxu0 %v994
    %1277 = vmatpush1.bf16.msra.mxu0 %v993
    %1278 = vmatprep.subr.bf16.mxu0 %v996
    %1279 = vmatpush1.bf16.msra.mxu0 %v995
    %1280 = vmatprep.subr.bf16.mxu0 %v998
    %1281 = vmatpush1.bf16.msra.mxu0 %v997
    %1282 = vmatprep.subr.bf16.mxu0 %v1000
    %1283 = vmatpush1.bf16.msra.mxu0 %v999
    %1284 = vmatprep.mubr.bf16.mxu0 %v348
    %1285 = vmatmul.mubr.bf16.gmra.mrb[0].mxu0 %v347
    %v1286 = vpop.f32.mrb[0].mxu0
    %v1287 = vadd.f32 %v1246, %v1286
    %v1288 = vpop.f32.mrb[0].mxu0
    %v1289 = vadd.f32 %v1248, %v1288
    %v1290 = vpop.f32.mrb[0].mxu0
    %v1291 = vpop.f32.mrb[0].mxu0
    %1292 = vdwg.mxu0
    %v1293 = vmax.f32 %v1287, 0.0
    %v1294 = vmax.f32 %v1289, 0.0
    %v1295 = vpack.c.bf16 %v1293, %v1293
    %v1296 = vpack.c.bf16 %v1294, %v1294
    %v1297 = vld [vmem:[%s5] sm:$0xf]
    %v1298 = vld [vmem:[%s5 + $0x4] sm:$0xf]
    %v1299 = vld [vmem:[%s5 + $0x8] sm:$0xf]
    %v1300 = vld [vmem:[%s5 + $0xc] sm:$0xf]
    %v1301 = vld [vmem:[%s5 + $0x10] sm:$0xf]
    %v1302 = vld [vmem:[%s5 + $0x14] sm:$0xf]
    %v1303 = vld [vmem:[%s5 + $0x18] sm:$0xf]
    %v1304 = vld [vmem:[%s5 + $0x1c] sm:$0xf]
    %v1305 = vld [vmem:[%s5 + $0x20] sm:$0xf]
    %v1306 = vld [vmem:[%s5 + $0x24] sm:$0xf]
    %v1307 = vld [vmem:[%s5 + $0x28] sm:$0xf]
    %v1308 = vld [vmem:[%s5 + $0x2c] sm:$0xf]
    %v1309 = vld [vmem:[%s5 + $0x30] sm:$0xf]
    %v1310 = vld [vmem:[%s5 + $0x34] sm:$0xf]
    %v1311 = vld [vmem:[%s5 + $0x38] sm:$0xf]
    %v1312 = vld [vmem:[%s5 + $0x3c] sm:$0xf]
    %v1313 = vld [vmem:[%s5 + $0x40] sm:$0xf]
    %v1314 = vld [vmem:[%s5 + $0x44] sm:$0xf]
    %v1315 = vld [vmem:[%s5 + $0x48] sm:$0xf]
    %v1316 = vld [vmem:[%s5 + $0x4c] sm:$0xf]
    %v1317 = vld [vmem:[%s5 + $0x50] sm:$0xf]
    %v1318 = vld [vmem:[%s5 + $0x54] sm:$0xf]
    %v1319 = vld [vmem:[%s5 + $0x58] sm:$0xf]
    %v1320 = vld [vmem:[%s5 + $0x5c] sm:$0xf]
    %v1321 = vld [vmem:[%s5 + $0x60] sm:$0xf]
    %v1322 = vld [vmem:[%s5 + $0x64] sm:$0xf]
    %v1323 = vld [vmem:[%s5 + $0x68] sm:$0xf]
    %v1324 = vld [vmem:[%s5 + $0x6c] sm:$0xf]
    %v1325 = vld [vmem:[%s5 + $0x70] sm:$0xf]
    %v1326 = vld [vmem:[%s5 + $0x74] sm:$0xf]
    %v1327 = vld [vmem:[%s5 + $0x78] sm:$0xf]
    %v1328 = vld [vmem:[%s5 + $0x7c] sm:$0xf]
    %v1329 = vld [vmem:[%s6] sm:$0x1]
    %v1331 = vlaneseq
    %v1332 = vshrl.u32 %v1331, 7
    %v1333 = vsub.s32 0, %v1332
    %v1334 = vrot.slane %v1329, %v1333
    %v1368 = vunpack.c.l.b16 %v1297
    %v1369 = vunpack.c.l.b16 %v1298
    %v1370 = vunpack.c.l.b16 %v1299
    %v1371 = vunpack.c.l.b16 %v1300
    %v1372 = vunpack.c.l.b16 %v1301
    %v1373 = vunpack.c.l.b16 %v1302
    %v1374 = vunpack.c.l.b16 %v1303
    %v1375 = vunpack.c.l.b16 %v1304
    %v1376 = vunpack.c.l.b16 %v1305
    %v1377 = vunpack.c.l.b16 %v1306
    %v1378 = vunpack.c.l.b16 %v1307
    %v1379 = vunpack.c.l.b16 %v1308
    %v1380 = vunpack.c.l.b16 %v1309
    %v1381 = vunpack.c.l.b16 %v1310
    %v1382 = vunpack.c.l.b16 %v1311
    %v1383 = vunpack.c.l.b16 %v1312
    %v1384 = vunpack.c.l.b16 %v1313
    %v1385 = vunpack.c.l.b16 %v1314
    %v1386 = vunpack.c.l.b16 %v1315
    %v1387 = vunpack.c.l.b16 %v1316
    %v1388 = vunpack.c.l.b16 %v1317
    %v1389 = vunpack.c.l.b16 %v1318
    %v1390 = vunpack.c.l.b16 %v1319
    %v1391 = vunpack.c.l.b16 %v1320
    %v1392 = vunpack.c.l.b16 %v1321
    %v1393 = vunpack.c.l.b16 %v1322
    %v1394 = vunpack.c.l.b16 %v1323
    %v1395 = vunpack.c.l.b16 %v1324
    %v1396 = vunpack.c.l.b16 %v1325
    %v1397 = vunpack.c.l.b16 %v1326
    %v1398 = vunpack.c.l.b16 %v1327
    %v1399 = vunpack.c.l.b16 %v1328
    %v1400 = vpack.c.b16 %v1369, %v1368
    %v1401 = vpack.c.b16 %v1371, %v1370
    %v1402 = vpack.c.b16 %v1373, %v1372
    %v1403 = vpack.c.b16 %v1375, %v1374
    %v1404 = vpack.c.b16 %v1377, %v1376
    %v1405 = vpack.c.b16 %v1379, %v1378
    %v1406 = vpack.c.b16 %v1381, %v1380
    %v1407 = vpack.c.b16 %v1383, %v1382
    %v1408 = vpack.c.b16 %v1385, %v1384
    %v1409 = vpack.c.b16 %v1387, %v1386
    %v1410 = vpack.c.b16 %v1389, %v1388
    %v1411 = vpack.c.b16 %v1391, %v1390
    %v1412 = vpack.c.b16 %v1393, %v1392
    %v1413 = vpack.c.b16 %v1395, %v1394
    %v1414 = vpack.c.b16 %v1397, %v1396
    %v1415 = vpack.c.b16 %v1399, %v1398
    %1432 = vmatprep.subr.bf16.mxu0 0
    %1433 = vmatpush1.bf16.msra.mxu0 %v1400
    %1434 = vmatprep.subr.bf16.mxu0 0
    %1435 = vmatpush1.bf16.msra.mxu0 %v1401
    %1436 = vmatprep.subr.bf16.mxu0 0
    %1437 = vmatpush1.bf16.msra.mxu0 %v1402
    %1438 = vmatprep.subr.bf16.mxu0 0
    %1439 = vmatpush1.bf16.msra.mxu0 %v1403
    %1440 = vmatprep.subr.bf16.mxu0 0
    %1441 = vmatpush1.bf16.msra.mxu0 %v1404
    %1442 = vmatprep.subr.bf16.mxu0 0
    %1443 = vmatpush1.bf16.msra.mxu0 %v1405
    %1444 = vmatprep.subr.bf16.mxu0 0
    %1445 = vmatpush1.bf16.msra.mxu0 %v1406
    %1446 = vmatprep.subr.bf16.mxu0 0
    %1447 = vmatpush1.bf16.msra.mxu0 %v1407
    %1448 = vmatprep.subr.bf16.mxu0 0
    %1449 = vmatpush1.bf16.msra.mxu0 %v1408
    %1450 = vmatprep.subr.bf16.mxu0 0
    %1451 = vmatpush1.bf16.msra.mxu0 %v1409
    %1452 = vmatprep.subr.bf16.mxu0 0
    %1453 = vmatpush1.bf16.msra.mxu0 %v1410
    %1454 = vmatprep.subr.bf16.mxu0 0
    %1455 = vmatpush1.bf16.msra.mxu0 %v1411
    %1456 = vmatprep.subr.bf16.mxu0 0
    %1457 = vmatpush1.bf16.msra.mxu0 %v1412
    %1458 = vmatprep.subr.bf16.mxu0 0
    %1459 = vmatpush1.bf16.msra.mxu0 %v1413
    %1460 = vmatprep.subr.bf16.mxu0 0
    %1461 = vmatpush1.bf16.msra.mxu0 %v1414
    %1462 = vmatprep.subr.bf16.mxu0 0
    %1463 = vmatpush1.bf16.msra.mxu0 %v1415
    %1464 = vmatprep.mubr.bf16.mxu0 %v1296
    %1465 = vmatmul.mubr.bf16.gmra.mrb[0].mxu0 %v1295
    %v1466 = vpop.f32.mrb[0].mxu0
    %v1467 = vadd.f32 %v1334, %v1466
    %v1468 = vpop.f32.mrb[0].mxu0
    %v1469 = vpop.f32.mrb[0].mxu0
    %v1470 = vpop.f32.mrb[0].mxu0
    %1471 = vdwg.mxu0
    %v1472 = vmul.f32 %v1467, 0.5
    %v1473 = vmul.f32 %v1472, 1.442695
    %v1474 = vpow.pop %v1473
    %1476 = vrot.lane.b32.xlu0 %v1474, 8
    %v1477 = vpop.permute.xlu0 %1476
    %v1479 = vmul.f32 %v73, %v1477
    %1481 = vrot.lane.b32.xlu0 %v1479, 112
    %v1482 = vpop.permute.xlu0 %1481
    %v1484 = vadd.f32 %v1467, %v1482
    %v1485 = vpack.c.bf16 %v1484, %v1484
    %v1486 = vld [vmem:[%s7] sm:$0xff]
    %v1487 = vld [vmem:[%s8] sm:$0x3]
    %v1489 = vlaneseq
    %v1490 = vshrl.u32 %v1489, 7
    %v1491 = vsub.s32 0, %v1490
    %v1492 = vrot.slane %v1487, %v1491
    %v1493 = vlaneseq
    %v1494 = vshrl.u32 %v1493, 7
    %v1495 = vsub.s32 1, %v1494
    %v1496 = vrot.slane %v1487, %v1495
    %v1500 = vunpack.c.l.b16 %v1486
    %v1501 = vunpack.c.h.b16 %v1486
    %v1502 = vpack.c.b16 %v1500, %v1500
    %v1503 = vpack.c.b16 %v1501, %v1501
    %vm1504 = vcmask 64512
    %v1506 = vsel %vm1504, %v1485, 0
    %vm1508 = vcmask 1043456
    %v1510 = vsel %vm1508, %v1502, 0
    %v1513 = vsel %vm1508, %v1503, 0
    %1515 = vmatprep.subr.bf16.mxu0 %v1513
    %1516 = vmatpush1.bf16.msra.mxu0 %v1510
    %1517 = vmatprep.subr.bf16.mxu0 0
    %1518 = vmatpush1.bf16.msra.mxu0 0
    %1519 = vmatprep.subr.bf16.mxu0 0
    %1520 = vmatpush1.bf16.msra.mxu0 0
    %1521 = vmatprep.subr.bf16.mxu0 0
    %1522 = vmatpush1.bf16.msra.mxu0 0
    %1523 = vmatprep.subr.bf16.mxu0 0
    %1524 = vmatpush1.bf16.msra.mxu0 0
    %1525 = vmatprep.subr.bf16.mxu0 0
    %1526 = vmatpush1.bf16.msra.mxu0 0
    %1527 = vmatprep.subr.bf16.mxu0 0
    %1528 = vmatpush1.bf16.msra.mxu0 0
    %1529 = vmatprep.subr.bf16.mxu0 0
    %1530 = vmatpush1.bf16.msra.mxu0 0
    %1531 = vmatprep.subr.bf16.mxu0 0
    %1532 = vmatpush1.bf16.msra.mxu0 0
    %1533 = vmatprep.subr.bf16.mxu0 0
    %1534 = vmatpush1.bf16.msra.mxu0 0
    %1535 = vmatprep.subr.bf16.mxu0 0
    %1536 = vmatpush1.bf16.msra.mxu0 0
    %1537 = vmatprep.subr.bf16.mxu0 0
    %1538 = vmatpush1.bf16.msra.mxu0 0
    %1539 = vmatprep.subr.bf16.mxu0 0
    %1540 = vmatpush1.bf16.msra.mxu0 0
    %1541 = vmatprep.subr.bf16.mxu0 0
    %1542 = vmatpush1.bf16.msra.mxu0 0
    %1543 = vmatprep.subr.bf16.mxu0 0
    %1544 = vmatpush1.bf16.msra.mxu0 0
    %1545 = vmatprep.subr.bf16.mxu0 0
    %1546 = vmatpush1.bf16.msra.mxu0 0
    %1547 = vmatprep.mubr.bf16.mxu0 0
    %1548 = vmatmul.mubr.bf16.gmra.mrb[0].mxu0 %v1506
    %v1549 = vpop.f32.mrb[0].mxu0
    %v1550 = vadd.f32 %v1492, %v1549
    %v1551 = vpop.f32.mrb[0].mxu0
    %v1552 = vadd.f32 %v1496, %v1551
    %v1553 = vpop.f32.mrb[0].mxu0
    %v1554 = vpop.f32.mrb[0].mxu0
    %1555 = vdwg.mxu0
    %v1556 = vmax.f32 %v1550, 0.0
    %v1557 = vmax.f32 %v1552, 0.0
    %v1558 = vpack.c.bf16 %v1556, %v1556
    %v1559 = vpack.c.bf16 %v1557, %v1557
    %v1560 = vld [vmem:[#allocation4] sm:$0xff]
    %v1561 = vld [vmem:[#allocation4 + $0x8] sm:$0xff]
    %v1562 = vld [vmem:[#allocation4 + $0x10] sm:$0xff]
    %v1563 = vld [vmem:[#allocation4 + $0x18] sm:$0xff]
    %v1564 = vld [vmem:[#allocation4 + $0x20] sm:$0xff]
    %v1565 = vld [vmem:[#allocation4 + $0x28] sm:$0xff]
    %v1566 = vld [vmem:[#allocation4 + $0x30] sm:$0xff]
    %v1567 = vld [vmem:[#allocation4 + $0x38] sm:$0xff]
    %v1568 = vld [vmem:[#allocation4 + $0x40] sm:$0xff]
    %v1569 = vld [vmem:[#allocation4 + $0x48] sm:$0xff]
    %v1570 = vld [vmem:[#allocation4 + $0x50] sm:$0xff]
    %v1571 = vld [vmem:[#allocation4 + $0x58] sm:$0xff]
    %v1572 = vld [vmem:[#allocation4 + $0x60] sm:$0xff]
    %v1573 = vld [vmem:[#allocation4 + $0x68] sm:$0xff]
    %v1574 = vld [vmem:[#allocation4 + $0x70] sm:$0xff]
    %v1575 = vld [vmem:[#allocation4 + $0x78] sm:$0xff]
    %v1576 = vld [vmem:[#allocation4 + $0x80] sm:$0xff]
    %v1577 = vld [vmem:[#allocation4 + $0x88] sm:$0xff]
    %v1578 = vld [vmem:[#allocation4 + $0x90] sm:$0xff]
    %v1579 = vld [vmem:[#allocation4 + $0x98] sm:$0xff]
    %v1580 = vld [vmem:[#allocation4 + $0xa0] sm:$0xff]
    %v1581 = vld [vmem:[#allocation4 + $0xa8] sm:$0xff]
    %v1582 = vld [vmem:[#allocation4 + $0xb0] sm:$0xff]
    %v1583 = vld [vmem:[#allocation4 + $0xb8] sm:$0xff]
    %v1584 = vld [vmem:[#allocation4 + $0xc0] sm:$0xff]
    %v1585 = vld [vmem:[#allocation4 + $0xc8] sm:$0xff]
    %v1586 = vld [vmem:[#allocation4 + $0xd0] sm:$0xff]
    %v1587 = vld [vmem:[#allocation4 + $0xd8] sm:$0xff]
    %v1588 = vld [vmem:[#allocation4 + $0xe0] sm:$0xff]
    %v1589 = vld [vmem:[#allocation4 + $0xe8] sm:$0xff]
    %v1590 = vld [vmem:[#allocation4 + $0xf0] sm:$0xff]
    %v1591 = vld [vmem:[#allocation4 + $0xf8] sm:$0xff]
    %v1592 = vld [vmem:[#allocation4 + $0x100] sm:$0xff]
    %v1593 = vld [vmem:[#allocation4 + $0x108] sm:$0xff]
    %v1594 = vld [vmem:[#allocation4 + $0x110] sm:$0xff]
    %v1595 = vld [vmem:[#allocation4 + $0x118] sm:$0xff]
    %v1596 = vld [vmem:[#allocation4 + $0x120] sm:$0xff]
    %v1597 = vld [vmem:[#allocation4 + $0x128] sm:$0xff]
    %v1598 = vld [vmem:[#allocation4 + $0x130] sm:$0xff]
    %v1599 = vld [vmem:[#allocation4 + $0x138] sm:$0xff]
    %v1600 = vld [vmem:[#allocation4 + $0x140] sm:$0xff]
    %v1601 = vld [vmem:[#allocation4 + $0x148] sm:$0xff]
    %v1602 = vld [vmem:[#allocation4 + $0x150] sm:$0xff]
    %v1603 = vld [vmem:[#allocation4 + $0x158] sm:$0xff]
    %v1604 = vld [vmem:[#allocation4 + $0x160] sm:$0xff]
    %v1605 = vld [vmem:[#allocation4 + $0x168] sm:$0xff]
    %v1606 = vld [vmem:[#allocation4 + $0x170] sm:$0xff]
    %v1607 = vld [vmem:[#allocation4 + $0x178] sm:$0xff]
    %v1608 = vld [vmem:[#allocation4 + $0x180] sm:$0xff]
    %v1609 = vld [vmem:[#allocation4 + $0x188] sm:$0xff]
    %v1610 = vld [vmem:[#allocation4 + $0x190] sm:$0xff]
    %v1611 = vld [vmem:[#allocation4 + $0x198] sm:$0xff]
    %v1612 = vld [vmem:[#allocation4 + $0x1a0] sm:$0xff]
    %v1613 = vld [vmem:[#allocation4 + $0x1a8] sm:$0xff]
    %v1614 = vld [vmem:[#allocation4 + $0x1b0] sm:$0xff]
    %v1615 = vld [vmem:[#allocation4 + $0x1b8] sm:$0xff]
    %v1616 = vld [vmem:[#allocation4 + $0x1c0] sm:$0xff]
    %v1617 = vld [vmem:[#allocation4 + $0x1c8] sm:$0xff]
    %v1618 = vld [vmem:[#allocation4 + $0x1d0] sm:$0xff]
    %v1619 = vld [vmem:[#allocation4 + $0x1d8] sm:$0xff]
    %v1620 = vld [vmem:[#allocation4 + $0x1e0] sm:$0xff]
    %v1621 = vld [vmem:[#allocation4 + $0x1e8] sm:$0xff]
    %v1622 = vld [vmem:[#allocation4 + $0x1f0] sm:$0xff]
    %v1623 = vld [vmem:[#allocation4 + $0x1f8] sm:$0xff]
    %v1624 = vld [vmem:[#allocation4 + $0x200] sm:$0xff]
    %v1625 = vld [vmem:[#allocation4 + $0x208] sm:$0xff]
    %v1626 = vld [vmem:[#allocation4 + $0x210] sm:$0xff]
    %v1627 = vld [vmem:[#allocation4 + $0x218] sm:$0xff]
    %v1628 = vld [vmem:[#allocation4 + $0x220] sm:$0xff]
    %v1629 = vld [vmem:[#allocation4 + $0x228] sm:$0xff]
    %v1630 = vld [vmem:[#allocation4 + $0x230] sm:$0xff]
    %v1631 = vld [vmem:[#allocation4 + $0x238] sm:$0xff]
    %v1632 = vld [vmem:[#allocation4 + $0x240] sm:$0xff]
    %v1633 = vld [vmem:[#allocation4 + $0x248] sm:$0xff]
    %v1634 = vld [vmem:[#allocation4 + $0x250] sm:$0xff]
    %v1635 = vld [vmem:[#allocation4 + $0x258] sm:$0xff]
    %v1636 = vld [vmem:[#allocation4 + $0x260] sm:$0xff]
    %v1637 = vld [vmem:[#allocation4 + $0x268] sm:$0xff]
    %v1638 = vld [vmem:[#allocation4 + $0x270] sm:$0xff]
    %v1639 = vld [vmem:[#allocation4 + $0x278] sm:$0xff]
    %v1640 = vld [vmem:[#allocation4 + $0x280] sm:$0xff]
    %v1641 = vld [vmem:[#allocation4 + $0x288] sm:$0xff]
    %v1642 = vld [vmem:[#allocation4 + $0x290] sm:$0xff]
    %v1643 = vld [vmem:[#allocation4 + $0x298] sm:$0xff]
    %v1644 = vld [vmem:[#allocation4 + $0x2a0] sm:$0xff]
    %v1645 = vld [vmem:[#allocation4 + $0x2a8] sm:$0xff]
    %v1646 = vld [vmem:[#allocation4 + $0x2b0] sm:$0xff]
    %v1647 = vld [vmem:[#allocation4 + $0x2b8] sm:$0xff]
    %v1648 = vld [vmem:[#allocation4 + $0x2c0] sm:$0xff]
    %v1649 = vld [vmem:[#allocation4 + $0x2c8] sm:$0xff]
    %v1650 = vld [vmem:[#allocation4 + $0x2d0] sm:$0xff]
    %v1651 = vld [vmem:[#allocation4 + $0x2d8] sm:$0xff]
    %v1652 = vld [vmem:[#allocation4 + $0x2e0] sm:$0xff]
    %v1653 = vld [vmem:[#allocation4 + $0x2e8] sm:$0xff]
    %v1654 = vld [vmem:[#allocation4 + $0x2f0] sm:$0xff]
    %v1655 = vld [vmem:[#allocation4 + $0x2f8] sm:$0xff]
    %v1656 = vld [vmem:[#allocation4 + $0x300] sm:$0xff]
    %v1657 = vld [vmem:[#allocation4 + $0x308] sm:$0xff]
    %v1658 = vld [vmem:[#allocation4 + $0x310] sm:$0xff]
    %v1659 = vld [vmem:[#allocation4 + $0x318] sm:$0xff]
    %v1660 = vld [vmem:[#allocation4 + $0x320] sm:$0xff]
    %v1661 = vld [vmem:[#allocation4 + $0x328] sm:$0xff]
    %v1662 = vld [vmem:[#allocation4 + $0x330] sm:$0xff]
    %v1663 = vld [vmem:[#allocation4 + $0x338] sm:$0xff]
    %v1664 = vld [vmem:[#allocation4 + $0x340] sm:$0xff]
    %v1665 = vld [vmem:[#allocation4 + $0x348] sm:$0xff]
    %v1666 = vld [vmem:[#allocation4 + $0x350] sm:$0xff]
    %v1667 = vld [vmem:[#allocation4 + $0x358] sm:$0xff]
    %v1668 = vld [vmem:[#allocation4 + $0x360] sm:$0xff]
    %v1669 = vld [vmem:[#allocation4 + $0x368] sm:$0xff]
    %v1670 = vld [vmem:[#allocation4 + $0x370] sm:$0xff]
    %v1671 = vld [vmem:[#allocation4 + $0x378] sm:$0xff]
    %v1672 = vld [vmem:[#allocation4 + $0x380] sm:$0xff]
    %v1673 = vld [vmem:[#allocation4 + $0x388] sm:$0xff]
    %v1674 = vld [vmem:[#allocation4 + $0x390] sm:$0xff]
    %v1675 = vld [vmem:[#allocation4 + $0x398] sm:$0xff]
    %v1676 = vld [vmem:[#allocation4 + $0x3a0] sm:$0xff]
    %v1677 = vld [vmem:[#allocation4 + $0x3a8] sm:$0xff]
    %v1678 = vld [vmem:[#allocation4 + $0x3b0] sm:$0xff]
    %v1679 = vld [vmem:[#allocation4 + $0x3b8] sm:$0xff]
    %v1680 = vld [vmem:[#allocation4 + $0x3c0] sm:$0xff]
    %v1681 = vld [vmem:[#allocation4 + $0x3c8] sm:$0xff]
    %v1682 = vld [vmem:[#allocation4 + $0x3d0] sm:$0xff]
    %v1683 = vld [vmem:[#allocation4 + $0x3d8] sm:$0xff]
    %v1684 = vld [vmem:[#allocation4 + $0x3e0] sm:$0xff]
    %v1685 = vld [vmem:[#allocation4 + $0x3e8] sm:$0xff]
    %v1686 = vld [vmem:[#allocation4 + $0x3f0] sm:$0xff]
    %v1687 = vld [vmem:[#allocation4 + $0x3f8] sm:$0xff]
    %v1688 = vld [vmem:[%s10] sm:$0xff]
    %v1690 = vlaneseq
    %v1691 = vshrl.u32 %v1690, 7
    %v1692 = vsub.s32 0, %v1691
    %v1693 = vrot.slane %v1688, %v1692
    %v1694 = vlaneseq
    %v1695 = vshrl.u32 %v1694, 7
    %v1696 = vsub.s32 1, %v1695
    %v1697 = vrot.slane %v1688, %v1696
    %v1698 = vlaneseq
    %v1699 = vshrl.u32 %v1698, 7
    %v1700 = vsub.s32 2, %v1699
    %v1701 = vrot.slane %v1688, %v1700
    %v1702 = vlaneseq
    %v1703 = vshrl.u32 %v1702, 7
    %v1704 = vsub.s32 3, %v1703
    %v1705 = vrot.slane %v1688, %v1704
    %v1706 = vlaneseq
    %v1707 = vshrl.u32 %v1706, 7
    %v1708 = vsub.s32 4, %v1707
    %v1709 = vrot.slane %v1688, %v1708
    %v1710 = vlaneseq
    %v1711 = vshrl.u32 %v1710, 7
    %v1712 = vsub.s32 5, %v1711
    %v1713 = vrot.slane %v1688, %v1712
    %v1714 = vlaneseq
    %v1715 = vshrl.u32 %v1714, 7
    %v1716 = vsub.s32 6, %v1715
    %v1717 = vrot.slane %v1688, %v1716
    %v1718 = vlaneseq
    %v1719 = vshrl.u32 %v1718, 7
    %v1720 = vsub.s32 7, %v1719
    %v1721 = vrot.slane %v1688, %v1720
    %v1858 = vunpack.c.l.b16 %v1560
    %v1859 = vunpack.c.h.b16 %v1560
    %v1860 = vunpack.c.l.b16 %v1561
    %v1861 = vunpack.c.h.b16 %v1561
    %v1862 = vunpack.c.l.b16 %v1562
    %v1863 = vunpack.c.h.b16 %v1562
    %v1864 = vunpack.c.l.b16 %v1563
    %v1865 = vunpack.c.h.b16 %v1563
    %v1866 = vunpack.c.l.b16 %v1564
    %v1867 = vunpack.c.h.b16 %v1564
    %v1868 = vunpack.c.l.b16 %v1565
    %v1869 = vunpack.c.h.b16 %v1565
    %v1870 = vunpack.c.l.b16 %v1566
    %v1871 = vunpack.c.h.b16 %v1566
    %v1872 = vunpack.c.l.b16 %v1567
    %v1873 = vunpack.c.h.b16 %v1567
    %v1874 = vunpack.c.l.b16 %v1568
    %v1875 = vunpack.c.h.b16 %v1568
    %v1876 = vunpack.c.l.b16 %v1569
    %v1877 = vunpack.c.h.b16 %v1569
    %v1878 = vunpack.c.l.b16 %v1570
    %v1879 = vunpack.c.h.b16 %v1570
    %v1880 = vunpack.c.l.b16 %v1571
    %v1881 = vunpack.c.h.b16 %v1571
    %v1882 = vunpack.c.l.b16 %v1572
    %v1883 = vunpack.c.h.b16 %v1572
    %v1884 = vunpack.c.l.b16 %v1573
    %v1885 = vunpack.c.h.b16 %v1573
    %v1886 = vunpack.c.l.b16 %v1574
    %v1887 = vunpack.c.h.b16 %v1574
    %v1888 = vunpack.c.l.b16 %v1575
    %v1889 = vunpack.c.h.b16 %v1575
    %v1890 = vunpack.c.l.b16 %v1576
    %v1891 = vunpack.c.h.b16 %v1576
    %v1892 = vunpack.c.l.b16 %v1577
    %v1893 = vunpack.c.h.b16 %v1577
    %v1894 = vunpack.c.l.b16 %v1578
    %v1895 = vunpack.c.h.b16 %v1578
    %v1896 = vunpack.c.l.b16 %v1579
    %v1897 = vunpack.c.h.b16 %v1579
    %v1898 = vunpack.c.l.b16 %v1580
    %v1899 = vunpack.c.h.b16 %v1580
    %v1900 = vunpack.c.l.b16 %v1581
    %v1901 = vunpack.c.h.b16 %v1581
    %v1902 = vunpack.c.l.b16 %v1582
    %v1903 = vunpack.c.h.b16 %v1582
    %v1904 = vunpack.c.l.b16 %v1583
    %v1905 = vunpack.c.h.b16 %v1583
    %v1906 = vunpack.c.l.b16 %v1584
    %v1907 = vunpack.c.h.b16 %v1584
    %v1908 = vunpack.c.l.b16 %v1585
    %v1909 = vunpack.c.h.b16 %v1585
    %v1910 = vunpack.c.l.b16 %v1586
    %v1911 = vunpack.c.h.b16 %v1586
    %v1912 = vunpack.c.l.b16 %v1587
    %v1913 = vunpack.c.h.b16 %v1587
    %v1914 = vunpack.c.l.b16 %v1588
    %v1915 = vunpack.c.h.b16 %v1588
    %v1916 = vunpack.c.l.b16 %v1589
    %v1917 = vunpack.c.h.b16 %v1589
    %v1918 = vunpack.c.l.b16 %v1590
    %v1919 = vunpack.c.h.b16 %v1590
    %v1920 = vunpack.c.l.b16 %v1591
    %v1921 = vunpack.c.h.b16 %v1591
    %v1922 = vunpack.c.l.b16 %v1592
    %v1923 = vunpack.c.h.b16 %v1592
    %v1924 = vunpack.c.l.b16 %v1593
    %v1925 = vunpack.c.h.b16 %v1593
    %v1926 = vunpack.c.l.b16 %v1594
    %v1927 = vunpack.c.h.b16 %v1594
    %v1928 = vunpack.c.l.b16 %v1595
    %v1929 = vunpack.c.h.b16 %v1595
    %v1930 = vunpack.c.l.b16 %v1596
    %v1931 = vunpack.c.h.b16 %v1596
    %v1932 = vunpack.c.l.b16 %v1597
    %v1933 = vunpack.c.h.b16 %v1597
    %v1934 = vunpack.c.l.b16 %v1598
    %v1935 = vunpack.c.h.b16 %v1598
    %v1936 = vunpack.c.l.b16 %v1599
    %v1937 = vunpack.c.h.b16 %v1599
    %v1938 = vunpack.c.l.b16 %v1600
    %v1939 = vunpack.c.h.b16 %v1600
    %v1940 = vunpack.c.l.b16 %v1601
    %v1941 = vunpack.c.h.b16 %v1601
    %v1942 = vunpack.c.l.b16 %v1602
    %v1943 = vunpack.c.h.b16 %v1602
    %v1944 = vunpack.c.l.b16 %v1603
    %v1945 = vunpack.c.h.b16 %v1603
    %v1946 = vunpack.c.l.b16 %v1604
    %v1947 = vunpack.c.h.b16 %v1604
    %v1948 = vunpack.c.l.b16 %v1605
    %v1949 = vunpack.c.h.b16 %v1605
    %v1950 = vunpack.c.l.b16 %v1606
    %v1951 = vunpack.c.h.b16 %v1606
    %v1952 = vunpack.c.l.b16 %v1607
    %v1953 = vunpack.c.h.b16 %v1607
    %v1954 = vunpack.c.l.b16 %v1608
    %v1955 = vunpack.c.h.b16 %v1608
    %v1956 = vunpack.c.l.b16 %v1609
    %v1957 = vunpack.c.h.b16 %v1609
    %v1958 = vunpack.c.l.b16 %v1610
    %v1959 = vunpack.c.h.b16 %v1610
    %v1960 = vunpack.c.l.b16 %v1611
    %v1961 = vunpack.c.h.b16 %v1611
    %v1962 = vunpack.c.l.b16 %v1612
    %v1963 = vunpack.c.h.b16 %v1612
    %v1964 = vunpack.c.l.b16 %v1613
    %v1965 = vunpack.c.h.b16 %v1613
    %v1966 = vunpack.c.l.b16 %v1614
    %v1967 = vunpack.c.h.b16 %v1614
    %v1968 = vunpack.c.l.b16 %v1615
    %v1969 = vunpack.c.h.b16 %v1615
    %v1970 = vunpack.c.l.b16 %v1616
    %v1971 = vunpack.c.h.b16 %v1616
    %v1972 = vunpack.c.l.b16 %v1617
    %v1973 = vunpack.c.h.b16 %v1617
    %v1974 = vunpack.c.l.b16 %v1618
    %v1975 = vunpack.c.h.b16 %v1618
    %v1976 = vunpack.c.l.b16 %v1619
    %v1977 = vunpack.c.h.b16 %v1619
    %v1978 = vunpack.c.l.b16 %v1620
    %v1979 = vunpack.c.h.b16 %v1620
    %v1980 = vunpack.c.l.b16 %v1621
    %v1981 = vunpack.c.h.b16 %v1621
    %v1982 = vunpack.c.l.b16 %v1622
    %v1983 = vunpack.c.h.b16 %v1622
    %v1984 = vunpack.c.l.b16 %v1623
    %v1985 = vunpack.c.h.b16 %v1623
    %v1986 = vunpack.c.l.b16 %v1624
    %v1987 = vunpack.c.h.b16 %v1624
    %v1988 = vunpack.c.l.b16 %v1625
    %v1989 = vunpack.c.h.b16 %v1625
    %v1990 = vunpack.c.l.b16 %v1626
    %v1991 = vunpack.c.h.b16 %v1626
    %v1992 = vunpack.c.l.b16 %v1627
    %v1993 = vunpack.c.h.b16 %v1627
    %v1994 = vunpack.c.l.b16 %v1628
    %v1995 = vunpack.c.h.b16 %v1628
    %v1996 = vunpack.c.l.b16 %v1629
    %v1997 = vunpack.c.h.b16 %v1629
    %v1998 = vunpack.c.l.b16 %v1630
    %v1999 = vunpack.c.h.b16 %v1630
    %v2000 = vunpack.c.l.b16 %v1631
    %v2001 = vunpack.c.h.b16 %v1631
    %v2002 = vunpack.c.l.b16 %v1632
    %v2003 = vunpack.c.h.b16 %v1632
    %v2004 = vunpack.c.l.b16 %v1633
    %v2005 = vunpack.c.h.b16 %v1633
    %v2006 = vunpack.c.l.b16 %v1634
    %v2007 = vunpack.c.h.b16 %v1634
    %v2008 = vunpack.c.l.b16 %v1635
    %v2009 = vunpack.c.h.b16 %v1635
    %v2010 = vunpack.c.l.b16 %v1636
    %v2011 = vunpack.c.h.b16 %v1636
    %v2012 = vunpack.c.l.b16 %v1637
    %v2013 = vunpack.c.h.b16 %v1637
    %v2014 = vunpack.c.l.b16 %v1638
    %v2015 = vunpack.c.h.b16 %v1638
    %v2016 = vunpack.c.l.b16 %v1639
    %v2017 = vunpack.c.h.b16 %v1639
    %v2018 = vunpack.c.l.b16 %v1640
    %v2019 = vunpack.c.h.b16 %v1640
    %v2020 = vunpack.c.l.b16 %v1641
    %v2021 = vunpack.c.h.b16 %v1641
    %v2022 = vunpack.c.l.b16 %v1642
    %v2023 = vunpack.c.h.b16 %v1642
    %v2024 = vunpack.c.l.b16 %v1643
    %v2025 = vunpack.c.h.b16 %v1643
    %v2026 = vunpack.c.l.b16 %v1644
    %v2027 = vunpack.c.h.b16 %v1644
    %v2028 = vunpack.c.l.b16 %v1645
    %v2029 = vunpack.c.h.b16 %v1645
    %v2030 = vunpack.c.l.b16 %v1646
    %v2031 = vunpack.c.h.b16 %v1646
    %v2032 = vunpack.c.l.b16 %v1647
    %v2033 = vunpack.c.h.b16 %v1647
    %v2034 = vunpack.c.l.b16 %v1648
    %v2035 = vunpack.c.h.b16 %v1648
    %v2036 = vunpack.c.l.b16 %v1649
    %v2037 = vunpack.c.h.b16 %v1649
    %v2038 = vunpack.c.l.b16 %v1650
    %v2039 = vunpack.c.h.b16 %v1650
    %v2040 = vunpack.c.l.b16 %v1651
    %v2041 = vunpack.c.h.b16 %v1651
    %v2042 = vunpack.c.l.b16 %v1652
    %v2043 = vunpack.c.h.b16 %v1652
    %v2044 = vunpack.c.l.b16 %v1653
    %v2045 = vunpack.c.h.b16 %v1653
    %v2046 = vunpack.c.l.b16 %v1654
    %v2047 = vunpack.c.h.b16 %v1654
    %v2048 = vunpack.c.l.b16 %v1655
    %v2049 = vunpack.c.h.b16 %v1655
    %v2050 = vunpack.c.l.b16 %v1656
    %v2051 = vunpack.c.h.b16 %v1656
    %v2052 = vunpack.c.l.b16 %v1657
    %v2053 = vunpack.c.h.b16 %v1657
    %v2054 = vunpack.c.l.b16 %v1658
    %v2055 = vunpack.c.h.b16 %v1658
    %v2056 = vunpack.c.l.b16 %v1659
    %v2057 = vunpack.c.h.b16 %v1659
    %v2058 = vunpack.c.l.b16 %v1660
    %v2059 = vunpack.c.h.b16 %v1660
    %v2060 = vunpack.c.l.b16 %v1661
    %v2061 = vunpack.c.h.b16 %v1661
    %v2062 = vunpack.c.l.b16 %v1662
    %v2063 = vunpack.c.h.b16 %v1662
    %v2064 = vunpack.c.l.b16 %v1663
    %v2065 = vunpack.c.h.b16 %v1663
    %v2066 = vunpack.c.l.b16 %v1664
    %v2067 = vunpack.c.h.b16 %v1664
    %v2068 = vunpack.c.l.b16 %v1665
    %v2069 = vunpack.c.h.b16 %v1665
    %v2070 = vunpack.c.l.b16 %v1666
    %v2071 = vunpack.c.h.b16 %v1666
    %v2072 = vunpack.c.l.b16 %v1667
    %v2073 = vunpack.c.h.b16 %v1667
    %v2074 = vunpack.c.l.b16 %v1668
    %v2075 = vunpack.c.h.b16 %v1668
    %v2076 = vunpack.c.l.b16 %v1669
    %v2077 = vunpack.c.h.b16 %v1669
    %v2078 = vunpack.c.l.b16 %v1670
    %v2079 = vunpack.c.h.b16 %v1670
    %v2080 = vunpack.c.l.b16 %v1671
    %v2081 = vunpack.c.h.b16 %v1671
    %v2082 = vunpack.c.l.b16 %v1672
    %v2083 = vunpack.c.h.b16 %v1672
    %v2084 = vunpack.c.l.b16 %v1673
    %v2085 = vunpack.c.h.b16 %v1673
    %v2086 = vunpack.c.l.b16 %v1674
    %v2087 = vunpack.c.h.b16 %v1674
    %v2088 = vunpack.c.l.b16 %v1675
    %v2089 = vunpack.c.h.b16 %v1675
    %v2090 = vunpack.c.l.b16 %v1676
    %v2091 = vunpack.c.h.b16 %v1676
    %v2092 = vunpack.c.l.b16 %v1677
    %v2093 = vunpack.c.h.b16 %v1677
    %v2094 = vunpack.c.l.b16 %v1678
    %v2095 = vunpack.c.h.b16 %v1678
    %v2096 = vunpack.c.l.b16 %v1679
    %v2097 = vunpack.c.h.b16 %v1679
    %v2098 = vunpack.c.l.b16 %v1680
    %v2099 = vunpack.c.h.b16 %v1680
    %v2100 = vunpack.c.l.b16 %v1681
    %v2101 = vunpack.c.h.b16 %v1681
    %v2102 = vunpack.c.l.b16 %v1682
    %v2103 = vunpack.c.h.b16 %v1682
    %v2104 = vunpack.c.l.b16 %v1683
    %v2105 = vunpack.c.h.b16 %v1683
    %v2106 = vunpack.c.l.b16 %v1684
    %v2107 = vunpack.c.h.b16 %v1684
    %v2108 = vunpack.c.l.b16 %v1685
    %v2109 = vunpack.c.h.b16 %v1685
    %v2110 = vunpack.c.l.b16 %v1686
    %v2111 = vunpack.c.h.b16 %v1686
    %v2112 = vunpack.c.l.b16 %v1687
    %v2113 = vunpack.c.h.b16 %v1687
    %v2114 = vpack.c.b16 %v1866, %v1858
    %v2115 = vpack.c.b16 %v1867, %v1859
    %v2116 = vpack.c.b16 %v1868, %v1860
    %v2117 = vpack.c.b16 %v1869, %v1861
    %v2118 = vpack.c.b16 %v1870, %v1862
    %v2119 = vpack.c.b16 %v1871, %v1863
    %v2120 = vpack.c.b16 %v1872, %v1864
    %v2121 = vpack.c.b16 %v1873, %v1865
    %v2122 = vpack.c.b16 %v1882, %v1874
    %v2123 = vpack.c.b16 %v1883, %v1875
    %v2124 = vpack.c.b16 %v1884, %v1876
    %v2125 = vpack.c.b16 %v1885, %v1877
    %v2126 = vpack.c.b16 %v1886, %v1878
    %v2127 = vpack.c.b16 %v1887, %v1879
    %v2128 = vpack.c.b16 %v1888, %v1880
    %v2129 = vpack.c.b16 %v1889, %v1881
    %v2130 = vpack.c.b16 %v1898, %v1890
    %v2131 = vpack.c.b16 %v1899, %v1891
    %v2132 = vpack.c.b16 %v1900, %v1892
    %v2133 = vpack.c.b16 %v1901, %v1893
    %v2134 = vpack.c.b16 %v1902, %v1894
    %v2135 = vpack.c.b16 %v1903, %v1895
    %v2136 = vpack.c.b16 %v1904, %v1896
    %v2137 = vpack.c.b16 %v1905, %v1897
    %v2138 = vpack.c.b16 %v1914, %v1906
    %v2139 = vpack.c.b16 %v1915, %v1907
    %v2140 = vpack.c.b16 %v1916, %v1908
    %v2141 = vpack.c.b16 %v1917, %v1909
    %v2142 = vpack.c.b16 %v1918, %v1910
    %v2143 = vpack.c.b16 %v1919, %v1911
    %v2144 = vpack.c.b16 %v1920, %v1912
    %v2145 = vpack.c.b16 %v1921, %v1913
    %v2146 = vpack.c.b16 %v1930, %v1922
    %v2147 = vpack.c.b16 %v1931, %v1923
    %v2148 = vpack.c.b16 %v1932, %v1924
    %v2149 = vpack.c.b16 %v1933, %v1925
    %v2150 = vpack.c.b16 %v1934, %v1926
    %v2151 = vpack.c.b16 %v1935, %v1927
    %v2152 = vpack.c.b16 %v1936, %v1928
    %v2153 = vpack.c.b16 %v1937, %v1929
    %v2154 = vpack.c.b16 %v1946, %v1938
    %v2155 = vpack.c.b16 %v1947, %v1939
    %v2156 = vpack.c.b16 %v1948, %v1940
    %v2157 = vpack.c.b16 %v1949, %v1941
    %v2158 = vpack.c.b16 %v1950, %v1942
    %v2159 = vpack.c.b16 %v1951, %v1943
    %v2160 = vpack.c.b16 %v1952, %v1944
    %v2161 = vpack.c.b16 %v1953, %v1945
    %v2162 = vpack.c.b16 %v1962, %v1954
    %v2163 = vpack.c.b16 %v1963, %v1955
    %v2164 = vpack.c.b16 %v1964, %v1956
    %v2165 = vpack.c.b16 %v1965, %v1957
    %v2166 = vpack.c.b16 %v1966, %v1958
    %v2167 = vpack.c.b16 %v1967, %v1959
    %v2168 = vpack.c.b16 %v1968, %v1960
    %v2169 = vpack.c.b16 %v1969, %v1961
    %v2170 = vpack.c.b16 %v1978, %v1970
    %v2171 = vpack.c.b16 %v1979, %v1971
    %v2172 = vpack.c.b16 %v1980, %v1972
    %v2173 = vpack.c.b16 %v1981, %v1973
    %v2174 = vpack.c.b16 %v1982, %v1974
    %v2175 = vpack.c.b16 %v1983, %v1975
    %v2176 = vpack.c.b16 %v1984, %v1976
    %v2177 = vpack.c.b16 %v1985, %v1977
    %v2178 = vpack.c.b16 %v1994, %v1986
    %v2179 = vpack.c.b16 %v1995, %v1987
    %v2180 = vpack.c.b16 %v1996, %v1988
    %v2181 = vpack.c.b16 %v1997, %v1989
    %v2182 = vpack.c.b16 %v1998, %v1990
    %v2183 = vpack.c.b16 %v1999, %v1991
    %v2184 = vpack.c.b16 %v2000, %v1992
    %v2185 = vpack.c.b16 %v2001, %v1993
    %v2186 = vpack.c.b16 %v2010, %v2002
    %v2187 = vpack.c.b16 %v2011, %v2003
    %v2188 = vpack.c.b16 %v2012, %v2004
    %v2189 = vpack.c.b16 %v2013, %v2005
    %v2190 = vpack.c.b16 %v2014, %v2006
    %v2191 = vpack.c.b16 %v2015, %v2007
    %v2192 = vpack.c.b16 %v2016, %v2008
    %v2193 = vpack.c.b16 %v2017, %v2009
    %v2194 = vpack.c.b16 %v2026, %v2018
    %v2195 = vpack.c.b16 %v2027, %v2019
    %v2196 = vpack.c.b16 %v2028, %v2020
    %v2197 = vpack.c.b16 %v2029, %v2021
    %v2198 = vpack.c.b16 %v2030, %v2022
    %v2199 = vpack.c.b16 %v2031, %v2023
    %v2200 = vpack.c.b16 %v2032, %v2024
    %v2201 = vpack.c.b16 %v2033, %v2025
    %v2202 = vpack.c.b16 %v2042, %v2034
    %v2203 = vpack.c.b16 %v2043, %v2035
    %v2204 = vpack.c.b16 %v2044, %v2036
    %v2205 = vpack.c.b16 %v2045, %v2037
    %v2206 = vpack.c.b16 %v2046, %v2038
    %v2207 = vpack.c.b16 %v2047, %v2039
    %v2208 = vpack.c.b16 %v2048, %v2040
    %v2209 = vpack.c.b16 %v2049, %v2041
    %v2210 = vpack.c.b16 %v2058, %v2050
    %v2211 = vpack.c.b16 %v2059, %v2051
    %v2212 = vpack.c.b16 %v2060, %v2052
    %v2213 = vpack.c.b16 %v2061, %v2053
    %v2214 = vpack.c.b16 %v2062, %v2054
    %v2215 = vpack.c.b16 %v2063, %v2055
    %v2216 = vpack.c.b16 %v2064, %v2056
    %v2217 = vpack.c.b16 %v2065, %v2057
    %v2218 = vpack.c.b16 %v2074, %v2066
    %v2219 = vpack.c.b16 %v2075, %v2067
    %v2220 = vpack.c.b16 %v2076, %v2068
    %v2221 = vpack.c.b16 %v2077, %v2069
    %v2222 = vpack.c.b16 %v2078, %v2070
    %v2223 = vpack.c.b16 %v2079, %v2071
    %v2224 = vpack.c.b16 %v2080, %v2072
    %v2225 = vpack.c.b16 %v2081, %v2073
    %v2226 = vpack.c.b16 %v2090, %v2082
    %v2227 = vpack.c.b16 %v2091, %v2083
    %v2228 = vpack.c.b16 %v2092, %v2084
    %v2229 = vpack.c.b16 %v2093, %v2085
    %v2230 = vpack.c.b16 %v2094, %v2086
    %v2231 = vpack.c.b16 %v2095, %v2087
    %v2232 = vpack.c.b16 %v2096, %v2088
    %v2233 = vpack.c.b16 %v2097, %v2089
    %v2234 = vpack.c.b16 %v2106, %v2098
    %v2235 = vpack.c.b16 %v2107, %v2099
    %v2236 = vpack.c.b16 %v2108, %v2100
    %v2237 = vpack.c.b16 %v2109, %v2101
    %v2238 = vpack.c.b16 %v2110, %v2102
    %v2239 = vpack.c.b16 %v2111, %v2103
    %v2240 = vpack.c.b16 %v2112, %v2104
    %v2241 = vpack.c.b16 %v2113, %v2105
    %2370 = vmatprep.subr.bf16.mxu0 %v2115
    %2371 = vmatpush1.bf16.msra.mxu0 %v2114
    %2372 = vmatprep.subr.bf16.mxu0 %v2123
    %2373 = vmatpush1.bf16.msra.mxu0 %v2122
    %2374 = vmatprep.subr.bf16.mxu0 %v2131
    %2375 = vmatpush1.bf16.msra.mxu0 %v2130
    %2376 = vmatprep.subr.bf16.mxu0 %v2139
    %2377 = vmatpush1.bf16.msra.mxu0 %v2138
    %2378 = vmatprep.subr.bf16.mxu0 %v2147
    %2379 = vmatpush1.bf16.msra.mxu0 %v2146
    %2380 = vmatprep.subr.bf16.mxu0 %v2155
    %2381 = vmatpush1.bf16.msra.mxu0 %v2154
    %2382 = vmatprep.subr.bf16.mxu0 %v2163
    %2383 = vmatpush1.bf16.msra.mxu0 %v2162
    %2384 = vmatprep.subr.bf16.mxu0 %v2171
    %2385 = vmatpush1.bf16.msra.mxu0 %v2170
    %2386 = vmatprep.subr.bf16.mxu0 %v2179
    %2387 = vmatpush1.bf16.msra.mxu0 %v2178
    %2388 = vmatprep.subr.bf16.mxu0 %v2187
    %2389 = vmatpush1.bf16.msra.mxu0 %v2186
    %2390 = vmatprep.subr.bf16.mxu0 %v2195
    %2391 = vmatpush1.bf16.msra.mxu0 %v2194
    %2392 = vmatprep.subr.bf16.mxu0 %v2203
    %2393 = vmatpush1.bf16.msra.mxu0 %v2202
    %2394 = vmatprep.subr.bf16.mxu0 %v2211
    %2395 = vmatpush1.bf16.msra.mxu0 %v2210
    %2396 = vmatprep.subr.bf16.mxu0 %v2219
    %2397 = vmatpush1.bf16.msra.mxu0 %v2218
    %2398 = vmatprep.subr.bf16.mxu0 %v2227
    %2399 = vmatpush1.bf16.msra.mxu0 %v2226
    %2400 = vmatprep.subr.bf16.mxu0 %v2235
    %2401 = vmatpush1.bf16.msra.mxu0 %v2234
    %2402 = vmatprep.mubr.bf16.mxu0 %v1559
    %2403 = vmatmul.mubr.bf16.gmra.mrb[0].mxu0 %v1558
    %v2404 = vpop.f32.mrb[0].mxu0
    %v2405 = vadd.f32 %v1693, %v2404
    %v2406 = vpop.f32.mrb[0].mxu0
    %v2407 = vadd.f32 %v1697, %v2406
    %v2408 = vpop.f32.mrb[0].mxu0
    %v2409 = vpop.f32.mrb[0].mxu0
    %2410 = vdwg.mxu0
    %2411 = vmatprep.subr.bf16.mxu0 %v2117
    %2412 = vmatpush1.bf16.msra.mxu0 %v2116
    %2413 = vmatprep.subr.bf16.mxu0 %v2125
    %2414 = vmatpush1.bf16.msra.mxu0 %v2124
    %2415 = vmatprep.subr.bf16.mxu0 %v2133
    %2416 = vmatpush1.bf16.msra.mxu0 %v2132
    %2417 = vmatprep.subr.bf16.mxu0 %v2141
    %2418 = vmatpush1.bf16.msra.mxu0 %v2140
    %2419 = vmatprep.subr.bf16.mxu0 %v2149
    %2420 = vmatpush1.bf16.msra.mxu0 %v2148
    %2421 = vmatprep.subr.bf16.mxu0 %v2157
    %2422 = vmatpush1.bf16.msra.mxu0 %v2156
    %2423 = vmatprep.subr.bf16.mxu0 %v2165
    %2424 = vmatpush1.bf16.msra.mxu0 %v2164
    %2425 = vmatprep.subr.bf16.mxu0 %v2173
    %2426 = vmatpush1.bf16.msra.mxu0 %v2172
    %2427 = vmatprep.subr.bf16.mxu0 %v2181
    %2428 = vmatpush1.bf16.msra.mxu0 %v2180
    %2429 = vmatprep.subr.bf16.mxu0 %v2189
    %2430 = vmatpush1.bf16.msra.mxu0 %v2188
    %2431 = vmatprep.subr.bf16.mxu0 %v2197
    %2432 = vmatpush1.bf16.msra.mxu0 %v2196
    %2433 = vmatprep.subr.bf16.mxu0 %v2205
    %2434 = vmatpush1.bf16.msra.mxu0 %v2204
    %2435 = vmatprep.subr.bf16.mxu0 %v2213
    %2436 = vmatpush1.bf16.msra.mxu0 %v2212
    %2437 = vmatprep.subr.bf16.mxu0 %v2221
    %2438 = vmatpush1.bf16.msra.mxu0 %v2220
    %2439 = vmatprep.subr.bf16.mxu0 %v2229
    %2440 = vmatpush1.bf16.msra.mxu0 %v2228
    %2441 = vmatprep.subr.bf16.mxu0 %v2237
    %2442 = vmatpush1.bf16.msra.mxu0 %v2236
    %2443 = vmatprep.mubr.bf16.mxu0 %v1559
    %2444 = vmatmul.mubr.bf16.gmra.mrb[0].mxu0 %v1558
    %v2445 = vpop.f32.mrb[0].mxu0
    %v2446 = vadd.f32 %v1701, %v2445
    %v2447 = vpop.f32.mrb[0].mxu0
    %v2448 = vadd.f32 %v1705, %v2447
    %v2449 = vpop.f32.mrb[0].mxu0
    %v2450 = vpop.f32.mrb[0].mxu0
    %2451 = vdwg.mxu0
    %2452 = vmatprep.subr.bf16.mxu0 %v2119
    %2453 = vmatpush1.bf16.msra.mxu0 %v2118
    %2454 = vmatprep.subr.bf16.mxu0 %v2127
    %2455 = vmatpush1.bf16.msra.mxu0 %v2126
    %2456 = vmatprep.subr.bf16.mxu0 %v2135
    %2457 = vmatpush1.bf16.msra.mxu0 %v2134
    %2458 = vmatprep.subr.bf16.mxu0 %v2143
    %2459 = vmatpush1.bf16.msra.mxu0 %v2142
    %2460 = vmatprep.subr.bf16.mxu0 %v2151
    %2461 = vmatpush1.bf16.msra.mxu0 %v2150
    %2462 = vmatprep.subr.bf16.mxu0 %v2159
    %2463 = vmatpush1.bf16.msra.mxu0 %v2158
    %2464 = vmatprep.subr.bf16.mxu0 %v2167
    %2465 = vmatpush1.bf16.msra.mxu0 %v2166
    %2466 = vmatprep.subr.bf16.mxu0 %v2175
    %2467 = vmatpush1.bf16.msra.mxu0 %v2174
    %2468 = vmatprep.subr.bf16.mxu0 %v2183
    %2469 = vmatpush1.bf16.msra.mxu0 %v2182
    %2470 = vmatprep.subr.bf16.mxu0 %v2191
    %2471 = vmatpush1.bf16.msra.mxu0 %v2190
    %2472 = vmatprep.subr.bf16.mxu0 %v2199
    %2473 = vmatpush1.bf16.msra.mxu0 %v2198
    %2474 = vmatprep.subr.bf16.mxu0 %v2207
    %2475 = vmatpush1.bf16.msra.mxu0 %v2206
    %2476 = vmatprep.subr.bf16.mxu0 %v2215
    %2477 = vmatpush1.bf16.msra.mxu0 %v2214
    %2478 = vmatprep.subr.bf16.mxu0 %v2223
    %2479 = vmatpush1.bf16.msra.mxu0 %v2222
    %2480 = vmatprep.subr.bf16.mxu0 %v2231
    %2481 = vmatpush1.bf16.msra.mxu0 %v2230
    %2482 = vmatprep.subr.bf16.mxu0 %v2239
    %2483 = vmatpush1.bf16.msra.mxu0 %v2238
    %2484 = vmatprep.mubr.bf16.mxu0 %v1559
    %2485 = vmatmul.mubr.bf16.gmra.mrb[0].mxu0 %v1558
    %v2486 = vpop.f32.mrb[0].mxu0
    %v2487 = vadd.f32 %v1709, %v2486
    %v2488 = vpop.f32.mrb[0].mxu0
    %v2489 = vadd.f32 %v1713, %v2488
    %v2490 = vpop.f32.mrb[0].mxu0
    %v2491 = vpop.f32.mrb[0].mxu0
    %2492 = vdwg.mxu0
    %2493 = vmatprep.subr.bf16.mxu0 %v2121
    %2494 = vmatpush1.bf16.msra.mxu0 %v2120
    %2495 = vmatprep.subr.bf16.mxu0 %v2129
    %2496 = vmatpush1.bf16.msra.mxu0 %v2128
    %2497 = vmatprep.subr.bf16.mxu0 %v2137
    %2498 = vmatpush1.bf16.msra.mxu0 %v2136
    %2499 = vmatprep.subr.bf16.mxu0 %v2145
    %2500 = vmatpush1.bf16.msra.mxu0 %v2144
    %2501 = vmatprep.subr.bf16.mxu0 %v2153
    %2502 = vmatpush1.bf16.msra.mxu0 %v2152
    %2503 = vmatprep.subr.bf16.mxu0 %v2161
    %2504 = vmatpush1.bf16.msra.mxu0 %v2160
    %2505 = vmatprep.subr.bf16.mxu0 %v2169
    %2506 = vmatpush1.bf16.msra.mxu0 %v2168
    %2507 = vmatprep.subr.bf16.mxu0 %v2177
    %2508 = vmatpush1.bf16.msra.mxu0 %v2176
    %2509 = vmatprep.subr.bf16.mxu0 %v2185
    %2510 = vmatpush1.bf16.msra.mxu0 %v2184
    %2511 = vmatprep.subr.bf16.mxu0 %v2193
    %2512 = vmatpush1.bf16.msra.mxu0 %v2192
    %2513 = vmatprep.subr.bf16.mxu0 %v2201
    %2514 = vmatpush1.bf16.msra.mxu0 %v2200
    %2515 = vmatprep.subr.bf16.mxu0 %v2209
    %2516 = vmatpush1.bf16.msra.mxu0 %v2208
    %2517 = vmatprep.subr.bf16.mxu0 %v2217
    %2518 = vmatpush1.bf16.msra.mxu0 %v2216
    %2519 = vmatprep.subr.bf16.mxu0 %v2225
    %2520 = vmatpush1.bf16.msra.mxu0 %v2224
    %2521 = vmatprep.subr.bf16.mxu0 %v2233
    %2522 = vmatpush1.bf16.msra.mxu0 %v2232
    %2523 = vmatprep.subr.bf16.mxu0 %v2241
    %2524 = vmatpush1.bf16.msra.mxu0 %v2240
    %2525 = vmatprep.mubr.bf16.mxu0 %v1559
    %2526 = vmatmul.mubr.bf16.gmra.mrb[0].mxu0 %v1558
    %v2527 = vpop.f32.mrb[0].mxu0
    %v2528 = vadd.f32 %v1717, %v2527
    %v2529 = vpop.f32.mrb[0].mxu0
    %v2530 = vadd.f32 %v1721, %v2529
    %v2531 = vpop.f32.mrb[0].mxu0
    %v2532 = vpop.f32.mrb[0].mxu0
    %2533 = vdwg.mxu0
    %v2534 = vmax.f32 %v2405, 0.0
    %v2535 = vmax.f32 %v2407, 0.0
    %v2536 = vmax.f32 %v2446, 0.0
    %v2537 = vmax.f32 %v2448, 0.0
    %v2538 = vmax.f32 %v2487, 0.0
    %v2539 = vmax.f32 %v2489, 0.0
    %v2540 = vmax.f32 %v2528, 0.0
    %v2541 = vmax.f32 %v2530, 0.0
    %v2542 = vpack.c.bf16 %v2534, %v2534
    %v2543 = vpack.c.bf16 %v2535, %v2535
    %v2544 = vpack.c.bf16 %v2536, %v2536
    %v2545 = vpack.c.bf16 %v2537, %v2537
    %v2546 = vpack.c.bf16 %v2538, %v2538
    %v2547 = vpack.c.bf16 %v2539, %v2539
    %v2548 = vpack.c.bf16 %v2540, %v2540
    %v2549 = vpack.c.bf16 %v2541, %v2541
    %v2550 = vld [vmem:[%s11] sm:$0xf]
    %v2551 = vld [vmem:[%s11 + $0x4] sm:$0xf]
    %v2552 = vld [vmem:[%s11 + $0x8] sm:$0xf]
    %v2553 = vld [vmem:[%s11 + $0xc] sm:$0xf]
    %v2554 = vld [vmem:[%s11 + $0x10] sm:$0xf]
    %v2555 = vld [vmem:[%s11 + $0x14] sm:$0xf]
    %v2556 = vld [vmem:[%s11 + $0x18] sm:$0xf]
    %v2557 = vld [vmem:[%s11 + $0x1c] sm:$0xf]
    %v2558 = vld [vmem:[%s11 + $0x20] sm:$0xf]
    %v2559 = vld [vmem:[%s11 + $0x24] sm:$0xf]
    %v2560 = vld [vmem:[%s11 + $0x28] sm:$0xf]
    %v2561 = vld [vmem:[%s11 + $0x2c] sm:$0xf]
    %v2562 = vld [vmem:[%s11 + $0x30] sm:$0xf]
    %v2563 = vld [vmem:[%s11 + $0x34] sm:$0xf]
    %v2564 = vld [vmem:[%s11 + $0x38] sm:$0xf]
    %v2565 = vld [vmem:[%s11 + $0x3c] sm:$0xf]
    %v2566 = vld [vmem:[%s11 + $0x40] sm:$0xf]
    %v2567 = vld [vmem:[%s11 + $0x44] sm:$0xf]
    %v2568 = vld [vmem:[%s11 + $0x48] sm:$0xf]
    %v2569 = vld [vmem:[%s11 + $0x4c] sm:$0xf]
    %v2570 = vld [vmem:[%s11 + $0x50] sm:$0xf]
    %v2571 = vld [vmem:[%s11 + $0x54] sm:$0xf]
    %v2572 = vld [vmem:[%s11 + $0x58] sm:$0xf]
    %v2573 = vld [vmem:[%s11 + $0x5c] sm:$0xf]
    %v2574 = vld [vmem:[%s11 + $0x60] sm:$0xf]
    %v2575 = vld [vmem:[%s11 + $0x64] sm:$0xf]
    %v2576 = vld [vmem:[%s11 + $0x68] sm:$0xf]
    %v2577 = vld [vmem:[%s11 + $0x6c] sm:$0xf]
    %v2578 = vld [vmem:[%s11 + $0x70] sm:$0xf]
    %v2579 = vld [vmem:[%s11 + $0x74] sm:$0xf]
    %v2580 = vld [vmem:[%s11 + $0x78] sm:$0xf]
    %v2581 = vld [vmem:[%s11 + $0x7c] sm:$0xf]
    %v2582 = vld [vmem:[%s11 + $0x80] sm:$0xf]
    %v2583 = vld [vmem:[%s11 + $0x84] sm:$0xf]
    %v2584 = vld [vmem:[%s11 + $0x88] sm:$0xf]
    %v2585 = vld [vmem:[%s11 + $0x8c] sm:$0xf]
    %v2586 = vld [vmem:[%s11 + $0x90] sm:$0xf]
    %v2587 = vld [vmem:[%s11 + $0x94] sm:$0xf]
    %v2588 = vld [vmem:[%s11 + $0x98] sm:$0xf]
    %v2589 = vld [vmem:[%s11 + $0x9c] sm:$0xf]
    %v2590 = vld [vmem:[%s11 + $0xa0] sm:$0xf]
    %v2591 = vld [vmem:[%s11 + $0xa4] sm:$0xf]
    %v2592 = vld [vmem:[%s11 + $0xa8] sm:$0xf]
    %v2593 = vld [vmem:[%s11 + $0xac] sm:$0xf]
    %v2594 = vld [vmem:[%s11 + $0xb0] sm:$0xf]
    %v2595 = vld [vmem:[%s11 + $0xb4] sm:$0xf]
    %v2596 = vld [vmem:[%s11 + $0xb8] sm:$0xf]
    %v2597 = vld [vmem:[%s11 + $0xbc] sm:$0xf]
    %v2598 = vld [vmem:[%s11 + $0xc0] sm:$0xf]
    %v2599 = vld [vmem:[%s11 + $0xc4] sm:$0xf]
    %v2600 = vld [vmem:[%s11 + $0xc8] sm:$0xf]
    %v2601 = vld [vmem:[%s11 + $0xcc] sm:$0xf]
    %v2602 = vld [vmem:[%s11 + $0xd0] sm:$0xf]
    %v2603 = vld [vmem:[%s11 + $0xd4] sm:$0xf]
    %v2604 = vld [vmem:[%s11 + $0xd8] sm:$0xf]
    %v2605 = vld [vmem:[%s11 + $0xdc] sm:$0xf]
    %v2606 = vld [vmem:[%s11 + $0xe0] sm:$0xf]
    %v2607 = vld [vmem:[%s11 + $0xe4] sm:$0xf]
    %v2608 = vld [vmem:[%s11 + $0xe8] sm:$0xf]
    %v2609 = vld [vmem:[%s11 + $0xec] sm:$0xf]
    %v2610 = vld [vmem:[%s11 + $0xf0] sm:$0xf]
    %v2611 = vld [vmem:[%s11 + $0xf4] sm:$0xf]
    %v2612 = vld [vmem:[%s11 + $0xf8] sm:$0xf]
    %v2613 = vld [vmem:[%s11 + $0xfc] sm:$0xf]
    %v2614 = vld [vmem:[%s11 + $0x100] sm:$0xf]
    %v2615 = vld [vmem:[%s11 + $0x104] sm:$0xf]
    %v2616 = vld [vmem:[%s11 + $0x108] sm:$0xf]
    %v2617 = vld [vmem:[%s11 + $0x10c] sm:$0xf]
    %v2618 = vld [vmem:[%s11 + $0x110] sm:$0xf]
    %v2619 = vld [vmem:[%s11 + $0x114] sm:$0xf]
    %v2620 = vld [vmem:[%s11 + $0x118] sm:$0xf]
    %v2621 = vld [vmem:[%s11 + $0x11c] sm:$0xf]
    %v2622 = vld [vmem:[%s11 + $0x120] sm:$0xf]
    %v2623 = vld [vmem:[%s11 + $0x124] sm:$0xf]
    %v2624 = vld [vmem:[%s11 + $0x128] sm:$0xf]
    %v2625 = vld [vmem:[%s11 + $0x12c] sm:$0xf]
    %v2626 = vld [vmem:[%s11 + $0x130] sm:$0xf]
    %v2627 = vld [vmem:[%s11 + $0x134] sm:$0xf]
    %v2628 = vld [vmem:[%s11 + $0x138] sm:$0xf]
    %v2629 = vld [vmem:[%s11 + $0x13c] sm:$0xf]
    %v2630 = vld [vmem:[%s11 + $0x140] sm:$0xf]
    %v2631 = vld [vmem:[%s11 + $0x144] sm:$0xf]
    %v2632 = vld [vmem:[%s11 + $0x148] sm:$0xf]
    %v2633 = vld [vmem:[%s11 + $0x14c] sm:$0xf]
    %v2634 = vld [vmem:[%s11 + $0x150] sm:$0xf]
    %v2635 = vld [vmem:[%s11 + $0x154] sm:$0xf]
    %v2636 = vld [vmem:[%s11 + $0x158] sm:$0xf]
    %v2637 = vld [vmem:[%s11 + $0x15c] sm:$0xf]
    %v2638 = vld [vmem:[%s11 + $0x160] sm:$0xf]
    %v2639 = vld [vmem:[%s11 + $0x164] sm:$0xf]
    %v2640 = vld [vmem:[%s11 + $0x168] sm:$0xf]
    %v2641 = vld [vmem:[%s11 + $0x16c] sm:$0xf]
    %v2642 = vld [vmem:[%s11 + $0x170] sm:$0xf]
    %v2643 = vld [vmem:[%s11 + $0x174] sm:$0xf]
    %v2644 = vld [vmem:[%s11 + $0x178] sm:$0xf]
    %v2645 = vld [vmem:[%s11 + $0x17c] sm:$0xf]
    %v2646 = vld [vmem:[%s11 + $0x180] sm:$0xf]
    %v2647 = vld [vmem:[%s11 + $0x184] sm:$0xf]
    %v2648 = vld [vmem:[%s11 + $0x188] sm:$0xf]
    %v2649 = vld [vmem:[%s11 + $0x18c] sm:$0xf]
    %v2650 = vld [vmem:[%s11 + $0x190] sm:$0xf]
    %v2651 = vld [vmem:[%s11 + $0x194] sm:$0xf]
    %v2652 = vld [vmem:[%s11 + $0x198] sm:$0xf]
    %v2653 = vld [vmem:[%s11 + $0x19c] sm:$0xf]
    %v2654 = vld [vmem:[%s11 + $0x1a0] sm:$0xf]
    %v2655 = vld [vmem:[%s11 + $0x1a4] sm:$0xf]
    %v2656 = vld [vmem:[%s11 + $0x1a8] sm:$0xf]
    %v2657 = vld [vmem:[%s11 + $0x1ac] sm:$0xf]
    %v2658 = vld [vmem:[%s11 + $0x1b0] sm:$0xf]
    %v2659 = vld [vmem:[%s11 + $0x1b4] sm:$0xf]
    %v2660 = vld [vmem:[%s11 + $0x1b8] sm:$0xf]
    %v2661 = vld [vmem:[%s11 + $0x1bc] sm:$0xf]
    %v2662 = vld [vmem:[%s11 + $0x1c0] sm:$0xf]
    %v2663 = vld [vmem:[%s11 + $0x1c4] sm:$0xf]
    %v2664 = vld [vmem:[%s11 + $0x1c8] sm:$0xf]
    %v2665 = vld [vmem:[%s11 + $0x1cc] sm:$0xf]
    %v2666 = vld [vmem:[%s11 + $0x1d0] sm:$0xf]
    %v2667 = vld [vmem:[%s11 + $0x1d4] sm:$0xf]
    %v2668 = vld [vmem:[%s11 + $0x1d8] sm:$0xf]
    %v2669 = vld [vmem:[%s11 + $0x1dc] sm:$0xf]
    %v2670 = vld [vmem:[%s11 + $0x1e0] sm:$0xf]
    %v2671 = vld [vmem:[%s11 + $0x1e4] sm:$0xf]
    %v2672 = vld [vmem:[%s11 + $0x1e8] sm:$0xf]
    %v2673 = vld [vmem:[%s11 + $0x1ec] sm:$0xf]
    %v2674 = vld [vmem:[%s11 + $0x1f0] sm:$0xf]
    %v2675 = vld [vmem:[%s11 + $0x1f4] sm:$0xf]
    %v2676 = vld [vmem:[%s11 + $0x1f8] sm:$0xf]
    %v2677 = vld [vmem:[%s11 + $0x1fc] sm:$0xf]
    %v2678 = vld [vmem:[%s12] sm:$0x1]
    %v2680 = vlaneseq
    %v2681 = vshrl.u32 %v2680, 7
    %v2682 = vsub.s32 0, %v2681
    %v2683 = vrot.slane %v2678, %v2682
    %v2813 = vunpack.c.l.b16 %v2550
    %v2814 = vunpack.c.l.b16 %v2551
    %v2815 = vunpack.c.l.b16 %v2552
    %v2816 = vunpack.c.l.b16 %v2553
    %v2817 = vunpack.c.l.b16 %v2554
    %v2818 = vunpack.c.l.b16 %v2555
    %v2819 = vunpack.c.l.b16 %v2556
    %v2820 = vunpack.c.l.b16 %v2557
    %v2821 = vunpack.c.l.b16 %v2558
    %v2822 = vunpack.c.l.b16 %v2559
    %v2823 = vunpack.c.l.b16 %v2560
    %v2824 = vunpack.c.l.b16 %v2561
    %v2825 = vunpack.c.l.b16 %v2562
    %v2826 = vunpack.c.l.b16 %v2563
    %v2827 = vunpack.c.l.b16 %v2564
    %v2828 = vunpack.c.l.b16 %v2565
    %v2829 = vunpack.c.l.b16 %v2566
    %v2830 = vunpack.c.l.b16 %v2567
    %v2831 = vunpack.c.l.b16 %v2568
    %v2832 = vunpack.c.l.b16 %v2569
    %v2833 = vunpack.c.l.b16 %v2570
    %v2834 = vunpack.c.l.b16 %v2571
    %v2835 = vunpack.c.l.b16 %v2572
    %v2836 = vunpack.c.l.b16 %v2573
    %v2837 = vunpack.c.l.b16 %v2574
    %v2838 = vunpack.c.l.b16 %v2575
    %v2839 = vunpack.c.l.b16 %v2576
    %v2840 = vunpack.c.l.b16 %v2577
    %v2841 = vunpack.c.l.b16 %v2578
    %v2842 = vunpack.c.l.b16 %v2579
    %v2843 = vunpack.c.l.b16 %v2580
    %v2844 = vunpack.c.l.b16 %v2581
    %v2845 = vunpack.c.l.b16 %v2582
    %v2846 = vunpack.c.l.b16 %v2583
    %v2847 = vunpack.c.l.b16 %v2584
    %v2848 = vunpack.c.l.b16 %v2585
    %v2849 = vunpack.c.l.b16 %v2586
    %v2850 = vunpack.c.l.b16 %v2587
    %v2851 = vunpack.c.l.b16 %v2588
    %v2852 = vunpack.c.l.b16 %v2589
    %v2853 = vunpack.c.l.b16 %v2590
    %v2854 = vunpack.c.l.b16 %v2591
    %v2855 = vunpack.c.l.b16 %v2592
    %v2856 = vunpack.c.l.b16 %v2593
    %v2857 = vunpack.c.l.b16 %v2594
    %v2858 = vunpack.c.l.b16 %v2595
    %v2859 = vunpack.c.l.b16 %v2596
    %v2860 = vunpack.c.l.b16 %v2597
    %v2861 = vunpack.c.l.b16 %v2598
    %v2862 = vunpack.c.l.b16 %v2599
    %v2863 = vunpack.c.l.b16 %v2600
    %v2864 = vunpack.c.l.b16 %v2601
    %v2865 = vunpack.c.l.b16 %v2602
    %v2866 = vunpack.c.l.b16 %v2603
    %v2867 = vunpack.c.l.b16 %v2604
    %v2868 = vunpack.c.l.b16 %v2605
    %v2869 = vunpack.c.l.b16 %v2606
    %v2870 = vunpack.c.l.b16 %v2607
    %v2871 = vunpack.c.l.b16 %v2608
    %v2872 = vunpack.c.l.b16 %v2609
    %v2873 = vunpack.c.l.b16 %v2610
    %v2874 = vunpack.c.l.b16 %v2611
    %v2875 = vunpack.c.l.b16 %v2612
    %v2876 = vunpack.c.l.b16 %v2613
    %v2877 = vunpack.c.l.b16 %v2614
    %v2878 = vunpack.c.l.b16 %v2615
    %v2879 = vunpack.c.l.b16 %v2616
    %v2880 = vunpack.c.l.b16 %v2617
    %v2881 = vunpack.c.l.b16 %v2618
    %v2882 = vunpack.c.l.b16 %v2619
    %v2883 = vunpack.c.l.b16 %v2620
    %v2884 = vunpack.c.l.b16 %v2621
    %v2885 = vunpack.c.l.b16 %v2622
    %v2886 = vunpack.c.l.b16 %v2623
    %v2887 = vunpack.c.l.b16 %v2624
    %v2888 = vunpack.c.l.b16 %v2625
    %v2889 = vunpack.c.l.b16 %v2626
    %v2890 = vunpack.c.l.b16 %v2627
    %v2891 = vunpack.c.l.b16 %v2628
    %v2892 = vunpack.c.l.b16 %v2629
    %v2893 = vunpack.c.l.b16 %v2630
    %v2894 = vunpack.c.l.b16 %v2631
    %v2895 = vunpack.c.l.b16 %v2632
    %v2896 = vunpack.c.l.b16 %v2633
    %v2897 = vunpack.c.l.b16 %v2634
    %v2898 = vunpack.c.l.b16 %v2635
    %v2899 = vunpack.c.l.b16 %v2636
    %v2900 = vunpack.c.l.b16 %v2637
    %v2901 = vunpack.c.l.b16 %v2638
    %v2902 = vunpack.c.l.b16 %v2639
    %v2903 = vunpack.c.l.b16 %v2640
    %v2904 = vunpack.c.l.b16 %v2641
    %v2905 = vunpack.c.l.b16 %v2642
    %v2906 = vunpack.c.l.b16 %v2643
    %v2907 = vunpack.c.l.b16 %v2644
    %v2908 = vunpack.c.l.b16 %v2645
    %v2909 = vunpack.c.l.b16 %v2646
    %v2910 = vunpack.c.l.b16 %v2647
    %v2911 = vunpack.c.l.b16 %v2648
    %v2912 = vunpack.c.l.b16 %v2649
    %v2913 = vunpack.c.l.b16 %v2650
    %v2914 = vunpack.c.l.b16 %v2651
    %v2915 = vunpack.c.l.b16 %v2652
    %v2916 = vunpack.c.l.b16 %v2653
    %v2917 = vunpack.c.l.b16 %v2654
    %v2918 = vunpack.c.l.b16 %v2655
    %v2919 = vunpack.c.l.b16 %v2656
    %v2920 = vunpack.c.l.b16 %v2657
    %v2921 = vunpack.c.l.b16 %v2658
    %v2922 = vunpack.c.l.b16 %v2659
    %v2923 = vunpack.c.l.b16 %v2660
    %v2924 = vunpack.c.l.b16 %v2661
    %v2925 = vunpack.c.l.b16 %v2662
    %v2926 = vunpack.c.l.b16 %v2663
    %v2927 = vunpack.c.l.b16 %v2664
    %v2928 = vunpack.c.l.b16 %v2665
    %v2929 = vunpack.c.l.b16 %v2666
    %v2930 = vunpack.c.l.b16 %v2667
    %v2931 = vunpack.c.l.b16 %v2668
    %v2932 = vunpack.c.l.b16 %v2669
    %v2933 = vunpack.c.l.b16 %v2670
    %v2934 = vunpack.c.l.b16 %v2671
    %v2935 = vunpack.c.l.b16 %v2672
    %v2936 = vunpack.c.l.b16 %v2673
    %v2937 = vunpack.c.l.b16 %v2674
    %v2938 = vunpack.c.l.b16 %v2675
    %v2939 = vunpack.c.l.b16 %v2676
    %v2940 = vunpack.c.l.b16 %v2677
    %v2941 = vpack.c.b16 %v2814, %v2813
    %v2942 = vpack.c.b16 %v2816, %v2815
    %v2943 = vpack.c.b16 %v2818, %v2817
    %v2944 = vpack.c.b16 %v2820, %v2819
    %v2945 = vpack.c.b16 %v2822, %v2821
    %v2946 = vpack.c.b16 %v2824, %v2823
    %v2947 = vpack.c.b16 %v2826, %v2825
    %v2948 = vpack.c.b16 %v2828, %v2827
    %v2949 = vpack.c.b16 %v2830, %v2829
    %v2950 = vpack.c.b16 %v2832, %v2831
    %v2951 = vpack.c.b16 %v2834, %v2833
    %v2952 = vpack.c.b16 %v2836, %v2835
    %v2953 = vpack.c.b16 %v2838, %v2837
    %v2954 = vpack.c.b16 %v2840, %v2839
    %v2955 = vpack.c.b16 %v2842, %v2841
    %v2956 = vpack.c.b16 %v2844, %v2843
    %v2957 = vpack.c.b16 %v2846, %v2845
    %v2958 = vpack.c.b16 %v2848, %v2847
    %v2959 = vpack.c.b16 %v2850, %v2849
    %v2960 = vpack.c.b16 %v2852, %v2851
    %v2961 = vpack.c.b16 %v2854, %v2853
    %v2962 = vpack.c.b16 %v2856, %v2855
    %v2963 = vpack.c.b16 %v2858, %v2857
    %v2964 = vpack.c.b16 %v2860, %v2859
    %v2965 = vpack.c.b16 %v2862, %v2861
    %v2966 = vpack.c.b16 %v2864, %v2863
    %v2967 = vpack.c.b16 %v2866, %v2865
    %v2968 = vpack.c.b16 %v2868, %v2867
    %v2969 = vpack.c.b16 %v2870, %v2869
    %v2970 = vpack.c.b16 %v2872, %v2871
    %v2971 = vpack.c.b16 %v2874, %v2873
    %v2972 = vpack.c.b16 %v2876, %v2875
    %v2973 = vpack.c.b16 %v2878, %v2877
    %v2974 = vpack.c.b16 %v2880, %v2879
    %v2975 = vpack.c.b16 %v2882, %v2881
    %v2976 = vpack.c.b16 %v2884, %v2883
    %v2977 = vpack.c.b16 %v2886, %v2885
    %v2978 = vpack.c.b16 %v2888, %v2887
    %v2979 = vpack.c.b16 %v2890, %v2889
    %v2980 = vpack.c.b16 %v2892, %v2891
    %v2981 = vpack.c.b16 %v2894, %v2893
    %v2982 = vpack.c.b16 %v2896, %v2895
    %v2983 = vpack.c.b16 %v2898, %v2897
    %v2984 = vpack.c.b16 %v2900, %v2899
    %v2985 = vpack.c.b16 %v2902, %v2901
    %v2986 = vpack.c.b16 %v2904, %v2903
    %v2987 = vpack.c.b16 %v2906, %v2905
    %v2988 = vpack.c.b16 %v2908, %v2907
    %v2989 = vpack.c.b16 %v2910, %v2909
    %v2990 = vpack.c.b16 %v2912, %v2911
    %v2991 = vpack.c.b16 %v2914, %v2913
    %v2992 = vpack.c.b16 %v2916, %v2915
    %v2993 = vpack.c.b16 %v2918, %v2917
    %v2994 = vpack.c.b16 %v2920, %v2919
    %v2995 = vpack.c.b16 %v2922, %v2921
    %v2996 = vpack.c.b16 %v2924, %v2923
    %v2997 = vpack.c.b16 %v2926, %v2925
    %v2998 = vpack.c.b16 %v2928, %v2927
    %v2999 = vpack.c.b16 %v2930, %v2929
    %v3000 = vpack.c.b16 %v2932, %v2931
    %v3001 = vpack.c.b16 %v2934, %v2933
    %v3002 = vpack.c.b16 %v2936, %v2935
    %v3003 = vpack.c.b16 %v2938, %v2937
    %v3004 = vpack.c.b16 %v2940, %v2939
    %3069 = vmatprep.subr.bf16.mxu0 0
    %3070 = vmatpush1.bf16.msra.mxu0 %v2941
    %3071 = vmatprep.subr.bf16.mxu0 0
    %3072 = vmatpush1.bf16.msra.mxu0 %v2942
    %3073 = vmatprep.subr.bf16.mxu0 0
    %3074 = vmatpush1.bf16.msra.mxu0 %v2943
    %3075 = vmatprep.subr.bf16.mxu0 0
    %3076 = vmatpush1.bf16.msra.mxu0 %v2944
    %3077 = vmatprep.subr.bf16.mxu0 0
    %3078 = vmatpush1.bf16.msra.mxu0 %v2945
    %3079 = vmatprep.subr.bf16.mxu0 0
    %3080 = vmatpush1.bf16.msra.mxu0 %v2946
    %3081 = vmatprep.subr.bf16.mxu0 0
    %3082 = vmatpush1.bf16.msra.mxu0 %v2947
    %3083 = vmatprep.subr.bf16.mxu0 0
    %3084 = vmatpush1.bf16.msra.mxu0 %v2948
    %3085 = vmatprep.subr.bf16.mxu0 0
    %3086 = vmatpush1.bf16.msra.mxu0 %v2949
    %3087 = vmatprep.subr.bf16.mxu0 0
    %3088 = vmatpush1.bf16.msra.mxu0 %v2950
    %3089 = vmatprep.subr.bf16.mxu0 0
    %3090 = vmatpush1.bf16.msra.mxu0 %v2951
    %3091 = vmatprep.subr.bf16.mxu0 0
    %3092 = vmatpush1.bf16.msra.mxu0 %v2952
    %3093 = vmatprep.subr.bf16.mxu0 0
    %3094 = vmatpush1.bf16.msra.mxu0 %v2953
    %3095 = vmatprep.subr.bf16.mxu0 0
    %3096 = vmatpush1.bf16.msra.mxu0 %v2954
    %3097 = vmatprep.subr.bf16.mxu0 0
    %3098 = vmatpush1.bf16.msra.mxu0 %v2955
    %3099 = vmatprep.subr.bf16.mxu0 0
    %3100 = vmatpush1.bf16.msra.mxu0 %v2956
    %3101 = vmatprep.mubr.bf16.mxu0 %v2543
    %3102 = vmatmul.mubr.bf16.gmra.mrb[0].mxu0 %v2542
    %v3103 = vpop.f32.mrb[0].mxu0
    %v3104 = vadd.f32 %v2683, %v3103
    %v3105 = vpop.f32.mrb[0].mxu0
    %v3106 = vpop.f32.mrb[0].mxu0
    %v3107 = vpop.f32.mrb[0].mxu0
    %3108 = vdwg.mxu0
    %3109 = vmatprep.subr.bf16.mxu0 0
    %3110 = vmatpush1.bf16.msra.mxu0 %v2957
    %3111 = vmatprep.subr.bf16.mxu0 0
    %3112 = vmatpush1.bf16.msra.mxu0 %v2958
    %3113 = vmatprep.subr.bf16.mxu0 0
    %3114 = vmatpush1.bf16.msra.mxu0 %v2959
    %3115 = vmatprep.subr.bf16.mxu0 0
    %3116 = vmatpush1.bf16.msra.mxu0 %v2960
    %3117 = vmatprep.subr.bf16.mxu0 0
    %3118 = vmatpush1.bf16.msra.mxu0 %v2961
    %3119 = vmatprep.subr.bf16.mxu0 0
    %3120 = vmatpush1.bf16.msra.mxu0 %v2962
    %3121 = vmatprep.subr.bf16.mxu0 0
    %3122 = vmatpush1.bf16.msra.mxu0 %v2963
    %3123 = vmatprep.subr.bf16.mxu0 0
    %3124 = vmatpush1.bf16.msra.mxu0 %v2964
    %3125 = vmatprep.subr.bf16.mxu0 0
    %3126 = vmatpush1.bf16.msra.mxu0 %v2965
    %3127 = vmatprep.subr.bf16.mxu0 0
    %3128 = vmatpush1.bf16.msra.mxu0 %v2966
    %3129 = vmatprep.subr.bf16.mxu0 0
    %3130 = vmatpush1.bf16.msra.mxu0 %v2967
    %3131 = vmatprep.subr.bf16.mxu0 0
    %3132 = vmatpush1.bf16.msra.mxu0 %v2968
    %3133 = vmatprep.subr.bf16.mxu0 0
    %3134 = vmatpush1.bf16.msra.mxu0 %v2969
    %3135 = vmatprep.subr.bf16.mxu0 0
    %3136 = vmatpush1.bf16.msra.mxu0 %v2970
    %3137 = vmatprep.subr.bf16.mxu0 0
    %3138 = vmatpush1.bf16.msra.mxu0 %v2971
    %3139 = vmatprep.subr.bf16.mxu0 0
    %3140 = vmatpush1.bf16.msra.mxu0 %v2972
    %3141 = vmatprep.mubr.bf16.mxu0 %v2545
    %3142 = vmatmul.mubr.bf16.gmra.mrb[0].mxu0 %v2544
    %v3143 = vpop.f32.mrb[0].mxu0
    %v3144 = vadd.f32 %v3104, %v3143
    %v3145 = vpop.f32.mrb[0].mxu0
    %v3146 = vpop.f32.mrb[0].mxu0
    %v3147 = vpop.f32.mrb[0].mxu0
    %3148 = vdwg.mxu0
    %3149 = vmatprep.subr.bf16.mxu0 0
    %3150 = vmatpush1.bf16.msra.mxu0 %v2973
    %3151 = vmatprep.subr.bf16.mxu0 0
    %3152 = vmatpush1.bf16.msra.mxu0 %v2974
    %3153 = vmatprep.subr.bf16.mxu0 0
    %3154 = vmatpush1.bf16.msra.mxu0 %v2975
    %3155 = vmatprep.subr.bf16.mxu0 0
    %3156 = vmatpush1.bf16.msra.mxu0 %v2976
    %3157 = vmatprep.subr.bf16.mxu0 0
    %3158 = vmatpush1.bf16.msra.mxu0 %v2977
    %3159 = vmatprep.subr.bf16.mxu0 0
    %3160 = vmatpush1.bf16.msra.mxu0 %v2978
    %3161 = vmatprep.subr.bf16.mxu0 0
    %3162 = vmatpush1.bf16.msra.mxu0 %v2979
    %3163 = vmatprep.subr.bf16.mxu0 0
    %3164 = vmatpush1.bf16.msra.mxu0 %v2980
    %3165 = vmatprep.subr.bf16.mxu0 0
    %3166 = vmatpush1.bf16.msra.mxu0 %v2981
    %3167 = vmatprep.subr.bf16.mxu0 0
    %3168 = vmatpush1.bf16.msra.mxu0 %v2982
    %3169 = vmatprep.subr.bf16.mxu0 0
    %3170 = vmatpush1.bf16.msra.mxu0 %v2983
    %3171 = vmatprep.subr.bf16.mxu0 0
    %3172 = vmatpush1.bf16.msra.mxu0 %v2984
    %3173 = vmatprep.subr.bf16.mxu0 0
    %3174 = vmatpush1.bf16.msra.mxu0 %v2985
    %3175 = vmatprep.subr.bf16.mxu0 0
    %3176 = vmatpush1.bf16.msra.mxu0 %v2986
    %3177 = vmatprep.subr.bf16.mxu0 0
    %3178 = vmatpush1.bf16.msra.mxu0 %v2987
    %3179 = vmatprep.subr.bf16.mxu0 0
    %3180 = vmatpush1.bf16.msra.mxu0 %v2988
    %3181 = vmatprep.mubr.bf16.mxu0 %v2547
    %3182 = vmatmul.mubr.bf16.gmra.mrb[0].mxu0 %v2546
    %v3183 = vpop.f32.mrb[0].mxu0
    %v3184 = vadd.f32 %v3144, %v3183
    %v3185 = vpop.f32.mrb[0].mxu0
    %v3186 = vpop.f32.mrb[0].mxu0
    %v3187 = vpop.f32.mrb[0].mxu0
    %3188 = vdwg.mxu0
    %3189 = vmatprep.subr.bf16.mxu0 0
    %3190 = vmatpush1.bf16.msra.mxu0 %v2989
    %3191 = vmatprep.subr.bf16.mxu0 0
    %3192 = vmatpush1.bf16.msra.mxu0 %v2990
    %3193 = vmatprep.subr.bf16.mxu0 0
    %3194 = vmatpush1.bf16.msra.mxu0 %v2991
    %3195 = vmatprep.subr.bf16.mxu0 0
    %3196 = vmatpush1.bf16.msra.mxu0 %v2992
    %3197 = vmatprep.subr.bf16.mxu0 0
    %3198 = vmatpush1.bf16.msra.mxu0 %v2993
    %3199 = vmatprep.subr.bf16.mxu0 0
    %3200 = vmatpush1.bf16.msra.mxu0 %v2994
    %3201 = vmatprep.subr.bf16.mxu0 0
    %3202 = vmatpush1.bf16.msra.mxu0 %v2995
    %3203 = vmatprep.subr.bf16.mxu0 0
    %3204 = vmatpush1.bf16.msra.mxu0 %v2996
    %3205 = vmatprep.subr.bf16.mxu0 0
    %3206 = vmatpush1.bf16.msra.mxu0 %v2997
    %3207 = vmatprep.subr.bf16.mxu0 0
    %3208 = vmatpush1.bf16.msra.mxu0 %v2998
    %3209 = vmatprep.subr.bf16.mxu0 0
    %3210 = vmatpush1.bf16.msra.mxu0 %v2999
    %3211 = vmatprep.subr.bf16.mxu0 0
    %3212 = vmatpush1.bf16.msra.mxu0 %v3000
    %3213 = vmatprep.subr.bf16.mxu0 0
    %3214 = vmatpush1.bf16.msra.mxu0 %v3001
    %3215 = vmatprep.subr.bf16.mxu0 0
    %3216 = vmatpush1.bf16.msra.mxu0 %v3002
    %3217 = vmatprep.subr.bf16.mxu0 0
    %3218 = vmatpush1.bf16.msra.mxu0 %v3003
    %3219 = vmatprep.subr.bf16.mxu0 0
    %3220 = vmatpush1.bf16.msra.mxu0 %v3004
    %3221 = vmatprep.mubr.bf16.mxu0 %v2549
    %3222 = vmatmul.mubr.bf16.gmra.mrb[0].mxu0 %v2548
    %v3223 = vpop.f32.mrb[0].mxu0
    %v3224 = vadd.f32 %v3184, %v3223
    %v3225 = vpop.f32.mrb[0].mxu0
    %v3226 = vpop.f32.mrb[0].mxu0
    %v3227 = vpop.f32.mrb[0].mxu0
    %3228 = vdwg.mxu0
    %v3229 = vxor.u32 %v3224, 2147483648
    %v3230 = vmul.f32 %v3229, 1.442695
    %v3231 = vpow.pop %v3230
    %v3232 = vadd.f32 %v3231, 1.0
    %v3233 = vrcp.pop %v3232
    %v3234 = vmul.f32 1.0, %v3233
    %3236 = vrot.lane.b32.xlu0 %v1467, 16
    %v3237 = vpop.permute.xlu0 %3236
    %v3239 = vsel %vm165, %v3234, %v3237
    %vm3240 = vcmask 261120
    %v3241 = vsel %vm3240, %v3239, 0.0
    %3242 = vst [vmem:[%s13] sm:$0xff] %v3241
    // Predicated region
    $region62: #{quake_vae_forward.1} parent=1 // pred_check
      _
    $region63: #{quake_vae_forward.1} parent=1 // pred_check_branch
      %3244 = sbr.rel (0) target = $region65
    $region64: #{quake_vae_forward.1} parent=1 // pred_region
      _
    $region65: #{quake_vae_forward.1} parent=1 // pred_fallthru
      _
    // Predicated region
    $region66: #{quake_vae_forward.1} parent=1 // pred_check
      _
    $region67: #{quake_vae_forward.1} parent=1 // pred_check_branch
      %3246 = sbr.rel (0) target = $region69
    $region68: #{quake_vae_forward.1} parent=1 // pred_region
      _
    $region69: #{quake_vae_forward.1} parent=1 // pred_fallthru
      _
    %3247 = vsyncpa [#allocation3], 1
    %3248 = vsyncpa [#allocation5], 1

</llo_original>
